<compile_context>
chip_gen: v7x
topology: tpu7x:2x2x1
jax: 0.10.0
libtpu: 0.0.40
codegen_flags: <defaults>
</compile_context>

<pallas_src>
import functools

import numpy as np
import jax
import jax.numpy as jnp
from jax.experimental import pallas as pl
from jax.experimental.pallas import tpu as pltpu


# ----------------------------------------------------------------------------- config
B, C, H, W = 2, 3, 16, 16          # input image (small synthetic shapes)
PATCH = 8                          # encoder.patch_size
D = 32                             # embed dim
NHEADS = 2                         # attention heads
DH = D // NHEADS                   # head dim
MLP = 4 * D                        # MLP hidden dim
NCLS = 4                           # number of segmentation classes
GH, GW = H // PATCH, W // PATCH    # patch grid
NTOK = GH * GW                     # number of patch tokens
T = NTOK + 1                       # +1 cls token
CPP = C * PATCH * PATCH            # flattened patch size
HW = H * W
EPS = 1e-6


# ----------------------------------------------------------------------------- bilinear operator (precomputed once)
def _bilinear_weight_np(out_size, in_size):
    """Row-stochastic interpolation matrix matching F.interpolate(bilinear, align_corners=False)."""
    if in_size == 1:
        return np.ones((out_size, 1), np.float32)
    scale = in_size / out_size
    dst = np.arange(out_size, dtype=np.float64)
    src = np.maximum((dst + 0.5) * scale - 0.5, 0.0)
    i0 = np.minimum(np.floor(src).astype(np.int64), in_size - 1)
    i1 = np.minimum(i0 + 1, in_size - 1)
    w1 = src - i0
    w0 = 1.0 - w1
    mat = np.zeros((out_size, in_size), np.float64)
    rows = np.arange(out_size)
    np.add.at(mat, (rows, i0), w0)
    np.add.at(mat, (rows, i1), w1)
    return mat.astype(np.float32)


# Combined separable bilinear upsample, flattened:  out[h*W+w] = sum_g Wup[h*W+w, g] * plane[g]
# Extended with a zero row for the cls token so `masks_full[:, 0]` (cls) is dropped by the matmul.
_WUP = np.kron(_bilinear_weight_np(H, GH), _bilinear_weight_np(W, GW))          # [H*W, NTOK]
WUP_T_EXT = jnp.asarray(
    np.concatenate([np.zeros((1, HW), np.float32), _WUP.T.astype(np.float32)], axis=0))  # [T, H*W]


# ----------------------------------------------------------------------------- fused kernel
def _segmenter_kernel(patches_ref, tok_bias_ref, patch_w_ref,
                      ln1_g_ref, ln1_b_ref, qkv_w_ref, qkv_b_ref,
                      proj_w_ref, proj_b_ref, ln2_g_ref, ln2_b_ref,
                      fc1_w_ref, fc1_b_ref, fc2_w_ref, fc2_b_ref,
                      lnf_g_ref, lnf_b_ref, head_wt_ref, head_b_ref, wup_ref,
                      out_ref, qkv_s):
    """One image per grid step: full ViT block + decoder head + bilinear upsample."""
    f32 = jnp.float32

    def layernorm(z, g_ref, b_ref):
        mu = jnp.mean(z, axis=-1, keepdims=True)
        zc = z - mu
        var = jnp.mean(zc * zc, axis=-1, keepdims=True)
        return zc * jax.lax.rsqrt(var + EPS) * g_ref[...] + b_ref[...]

    # ---- patch embedding + cls/pos.  Row 0 of `patches` is zero, so row 0 of the
    #      matmul is 0 and tok_bias[0] = cls_token + pos[0]; rows 1.. get patch_b + pos.
    x = jnp.dot(patches_ref[0, :, :], patch_w_ref[...],
                preferred_element_type=f32) + tok_bias_ref[...]                 # [T, D]

    # ---- attention block (pre-LN), residual + output projection fused ----
    h = layernorm(x, ln1_g_ref, ln1_b_ref)
    qkv_s[...] = jnp.dot(h, qkv_w_ref[...], preferred_element_type=f32) + qkv_b_ref[...]  # [T, 3D]
    scale = 1.0 / (DH ** 0.5)
    attn_proj = jnp.zeros((T, D), f32)
    for hh in range(NHEADS):                                   # static unroll over heads
        qh = qkv_s[:, hh * DH:(hh + 1) * DH]                   # [T, DH] (zero-cost ref views)
        kh = qkv_s[:, D + hh * DH:D + (hh + 1) * DH]
        vh = qkv_s[:, 2 * D + hh * DH:2 * D + (hh + 1) * DH]
        s = jax.lax.dot_general(qh, kh, (((1,), (1,)), ((), ())),
                                preferred_element_type=f32) * scale             # [T, T]
        s = s - jnp.max(s, axis=-1, keepdims=True)
        p = jnp.exp(s)
        p = p * pl.reciprocal(jnp.sum(p, axis=-1, keepdims=True), approx=True)  # EUP slot
        oh = jnp.dot(p, vh, preferred_element_type=f32)                          # [T, DH]
        # concat_h(oh) @ proj_w  ==  sum_h  oh @ proj_w[h*DH:(h+1)*DH, :]
        attn_proj = attn_proj + jnp.dot(oh, proj_w_ref[hh * DH:(hh + 1) * DH, :],
                                        preferred_element_type=f32)
    x = x + attn_proj + proj_b_ref[...]                                          # fused residual

    # ---- MLP block (pre-LN), residual fused ----
    h = layernorm(x, ln2_g_ref, ln2_b_ref)
    h = jnp.dot(h, fc1_w_ref[...], preferred_element_type=f32) + fc1_b_ref[...]
    h = 0.5 * h * (1.0 + jax.lax.erf(h * 0.7071067811865476))                    # exact GELU
    x = x + jnp.dot(h, fc2_w_ref[...], preferred_element_type=f32) + fc2_b_ref[...]

    # ---- final LN ----
    x = layernorm(x, lnf_g_ref, lnf_b_ref)

    # ---- decoder head + bilinear upsample, lane-dense [NCLS, H*W] output ----
    # masks_full[c, t] = sum_d head_w[d, c] * x[t, d] + head_b[c]   (cls column killed by wup row 0)
    masks = jax.lax.dot_general(head_wt_ref[...], x, (((1,), (1,)), ((), ())),
                                preferred_element_type=f32) + head_b_ref[...]    # [NCLS, T]
    out_ref[0, :, :] = jnp.dot(masks, wup_ref[...],
                               preferred_element_type=f32).astype(out_ref.dtype)  # [NCLS, H*W]


# ----------------------------------------------------------------------------- params
def init_params(key):
    ks = jax.random.split(key, 10)
    nrm = lambda k, shape: (0.02 * jax.random.normal(k, shape, jnp.float32))
    zeros = lambda *s: jnp.zeros(s, jnp.float32)
    ones = lambda *s: jnp.ones(s, jnp.float32)
    return dict(
        patch_w=nrm(ks[0], (CPP, D)), patch_b=zeros(1, D),
        cls_token=nrm(ks[1], (1, 1, D)),
        pos_embed=nrm(ks[2], (1, T, D)),
        ln1_g=ones(1, D), ln1_b=zeros(1, D),
        qkv_w=nrm(ks[3], (D, 3 * D)), qkv_b=zeros(1, 3 * D),
        proj_w=nrm(ks[4], (D, D)), proj_b=zeros(1, D),
        ln2_g=ones(1, D), ln2_b=zeros(1, D),
        fc1_w=nrm(ks[5], (D, MLP)), fc1_b=zeros(1, MLP),
        fc2_w=nrm(ks[6], (MLP, D)), fc2_b=zeros(1, D),
        lnf_g=ones(1, D), lnf_b=zeros(1, D),
        head_w=nrm(ks[7], (D, NCLS)), head_b=zeros(1, NCLS),
    )


def prepare_params(p):
    """One-time parameter packing (hoisted out of forward): fold cls/pos/patch_b into a
    per-token bias, pre-transpose the head weight, attach the precomputed bilinear op."""
    tok_bias = jnp.concatenate(
        [p["cls_token"].reshape(1, D) + p["pos_embed"][0, 0:1, :],
         p["patch_b"] + p["pos_embed"][0, 1:, :]],
        axis=0)                                                   # [T, D]
    return dict(
        tok_bias=tok_bias,
        patch_w=p["patch_w"],
        ln1_g=p["ln1_g"], ln1_b=p["ln1_b"],
        qkv_w=p["qkv_w"], qkv_b=p["qkv_b"],
        proj_w=p["proj_w"], proj_b=p["proj_b"],
        ln2_g=p["ln2_g"], ln2_b=p["ln2_b"],
        fc1_w=p["fc1_w"], fc1_b=p["fc1_b"],
        fc2_w=p["fc2_w"], fc2_b=p["fc2_b"],
        lnf_g=p["lnf_g"], lnf_b=p["lnf_b"],
        head_wT=p["head_w"].T,                                    # [NCLS, D]
        head_bc=p["head_b"].reshape(NCLS, 1),                     # [NCLS, 1]
        wup=WUP_T_EXT,                                            # [T, H*W]
    )


_PARAM_ORDER = ("tok_bias", "patch_w", "ln1_g", "ln1_b", "qkv_w", "qkv_b",
                "proj_w", "proj_b", "ln2_g", "ln2_b", "fc1_w", "fc1_b",
                "fc2_w", "fc2_b", "lnf_g", "lnf_b", "head_wT", "head_bc", "wup")


def _bcast_index_map(i, *, ndim):
    return (0,) * ndim


# ----------------------------------------------------------------------------- forward
def segmenter_forward(x, fp):
    """Segmenter.forward: encode, drop cls token, decode, bilinear upsample to (H, W)."""
    b = x.shape[0]
    # image -> patch rows (layout glue only); row 0 per image is the zero "cls slot".
    patches = x.reshape(b, C, GH, PATCH, GW, PATCH).transpose(0, 2, 4, 1, 3, 5)
    patches = patches.reshape(b, NTOK, CPP)
    patches_ext = jnp.concatenate(
        [jnp.zeros((b, 1, CPP), patches.dtype), patches], axis=1)      # [B, T, CPP]

    weights = [fp[k] for k in _PARAM_ORDER]
    w_specs = [pl.BlockSpec(w.shape, functools.partial(_bcast_index_map, ndim=w.ndim))
               for w in weights]

    out = pl.pallas_call(
        _segmenter_kernel,
        out_shape=jax.ShapeDtypeStruct((b, NCLS, HW), jnp.float32),
        grid=(b,),
        in_specs=[pl.BlockSpec((1, T, CPP), lambda i: (i, 0, 0))] + w_specs,
        out_specs=pl.BlockSpec((1, NCLS, HW), lambda i: (i, 0, 0)),    # lane-dense slab
        scratch_shapes=[pltpu.VMEM((T, 3 * D), jnp.float32)],          # QKV scratch
        compiler_params=pltpu.CompilerParams(dimension_semantics=("parallel",)),
    )(patches_ext, *weights)

    return out.reshape(b, NCLS, H, W)


# ----------------------------------------------------------------------------- main
if __name__ == "__main__":
    key = jax.random.PRNGKey(0)
    k_x, k_p = jax.random.split(key)
    x = jax.random.normal(k_x, (B, C, H, W), jnp.float32)
    params = init_params(k_p)
    fused_params = prepare_params(params)

    fwd = jax.jit(segmenter_forward)
    masks = jax.block_until_ready(fwd(x, fused_params))

    assert masks.shape == (B, NCLS, H, W), masks.shape
    assert bool(jnp.all(jnp.isfinite(masks)))
    print("KERNEL_OK")
</pallas_src>

<mosaic_0001>
module attributes {stable_mosaic.version = 11 : i64} {
  func.func @_segmenter_kernel(%arg0: i32, %arg1: memref<1x5x192xf32, #tpu.memory_space<vmem>>, %arg2: memref<5x32xf32, #tpu.memory_space<vmem>>, %arg3: memref<192x32xf32, #tpu.memory_space<vmem>>, %arg4: memref<1x32xf32, #tpu.memory_space<vmem>>, %arg5: memref<1x32xf32, #tpu.memory_space<vmem>>, %arg6: memref<32x96xf32, #tpu.memory_space<vmem>>, %arg7: memref<1x96xf32, #tpu.memory_space<vmem>>, %arg8: memref<32x32xf32, #tpu.memory_space<vmem>>, %arg9: memref<1x32xf32, #tpu.memory_space<vmem>>, %arg10: memref<1x32xf32, #tpu.memory_space<vmem>>, %arg11: memref<1x32xf32, #tpu.memory_space<vmem>>, %arg12: memref<32x128xf32, #tpu.memory_space<vmem>>, %arg13: memref<1x128xf32, #tpu.memory_space<vmem>>, %arg14: memref<128x32xf32, #tpu.memory_space<vmem>>, %arg15: memref<1x32xf32, #tpu.memory_space<vmem>>, %arg16: memref<1x32xf32, #tpu.memory_space<vmem>>, %arg17: memref<1x32xf32, #tpu.memory_space<vmem>>, %arg18: memref<4x32xf32, #tpu.memory_space<vmem>>, %arg19: memref<4x1xf32, #tpu.memory_space<vmem>>, %arg20: memref<5x256xf32, #tpu.memory_space<vmem>>, %arg21: memref<1x4x256xf32, #tpu.memory_space<vmem>>, %arg22: memref<5x96xf32, #tpu.memory_space<vmem>>) attributes {dimension_semantics = [#tpu.dimension_semantics<parallel>], iteration_bounds = array<i64: 2>, scalar_prefetch = 0 : i64, scratch_operands = 1 : i64, tpu.core_type = #tpu.core_type<tc>, window_params = [{transform_indices = @transform_0, window_bounds = array<i64: 1, 5, 192>}, {pipeline_mode = #tpu.pipeline_mode<synchronous>, transform_indices = @transform_1, window_bounds = array<i64: 5, 32>}, {pipeline_mode = #tpu.pipeline_mode<synchronous>, transform_indices = @transform_2, window_bounds = array<i64: 192, 32>}, {pipeline_mode = #tpu.pipeline_mode<synchronous>, transform_indices = @transform_3, window_bounds = array<i64: 1, 32>}, {pipeline_mode = #tpu.pipeline_mode<synchronous>, transform_indices = @transform_4, window_bounds = array<i64: 1, 32>}, {pipeline_mode = #tpu.pipeline_mode<synchronous>, transform_indices = @transform_5, window_bounds = array<i64: 32, 96>}, {pipeline_mode = #tpu.pipeline_mode<synchronous>, transform_indices = @transform_6, window_bounds = array<i64: 1, 96>}, {pipeline_mode = #tpu.pipeline_mode<synchronous>, transform_indices = @transform_7, window_bounds = array<i64: 32, 32>}, {pipeline_mode = #tpu.pipeline_mode<synchronous>, transform_indices = @transform_8, window_bounds = array<i64: 1, 32>}, {pipeline_mode = #tpu.pipeline_mode<synchronous>, transform_indices = @transform_9, window_bounds = array<i64: 1, 32>}, {pipeline_mode = #tpu.pipeline_mode<synchronous>, transform_indices = @transform_10, window_bounds = array<i64: 1, 32>}, {pipeline_mode = #tpu.pipeline_mode<synchronous>, transform_indices = @transform_11, window_bounds = array<i64: 32, 128>}, {pipeline_mode = #tpu.pipeline_mode<synchronous>, transform_indices = @transform_12, window_bounds = array<i64: 1, 128>}, {pipeline_mode = #tpu.pipeline_mode<synchronous>, transform_indices = @transform_13, window_bounds = array<i64: 128, 32>}, {pipeline_mode = #tpu.pipeline_mode<synchronous>, transform_indices = @transform_14, window_bounds = array<i64: 1, 32>}, {pipeline_mode = #tpu.pipeline_mode<synchronous>, transform_indices = @transform_15, window_bounds = array<i64: 1, 32>}, {pipeline_mode = #tpu.pipeline_mode<synchronous>, transform_indices = @transform_16, window_bounds = array<i64: 1, 32>}, {pipeline_mode = #tpu.pipeline_mode<synchronous>, transform_indices = @transform_17, window_bounds = array<i64: 4, 32>}, {pipeline_mode = #tpu.pipeline_mode<synchronous>, transform_indices = @transform_18, window_bounds = array<i64: 4, 1>}, {pipeline_mode = #tpu.pipeline_mode<synchronous>, transform_indices = @transform_19, window_bounds = array<i64: 5, 256>}, {transform_indices = @transform_20, window_bounds = array<i64: 1, 4, 256>}]} {
    %c0 = arith.constant 0 : index
    %c0_0 = arith.constant 0 : index
    %c0_1 = arith.constant 0 : index
    %0 = vector.load %arg1[%c0, %c0_0, %c0_1] : memref<1x5x192xf32, #tpu.memory_space<vmem>>, vector<1x5x192xf32>
    %1 = vector.shape_cast %0 : vector<1x5x192xf32> to vector<5x192xf32>
    %c0_2 = arith.constant 0 : index
    %c0_3 = arith.constant 0 : index
    %2 = vector.load %arg3[%c0_2, %c0_3] : memref<192x32xf32, #tpu.memory_space<vmem>>, vector<192x32xf32>
    %cst = arith.constant dense<0.000000e+00> : vector<5x32xf32>
    %3 = tpu.matmul %1, %2, %cst {dimension_numbers = #tpu.dot_dimension_numbers<[1], [0], [0], [1], [0, 0, 1, 1], [], []>} : vector<5x192xf32>, vector<192x32xf32>, vector<5x32xf32> -> vector<5x32xf32>
    %c0_4 = arith.constant 0 : index
    %c0_5 = arith.constant 0 : index
    %4 = vector.load %arg2[%c0_4, %c0_5] : memref<5x32xf32, #tpu.memory_space<vmem>>, vector<5x32xf32>
    %5 = arith.addf %3, %4 : vector<5x32xf32>
    %cst_6 = arith.constant dense<0.000000e+00> : vector<5xf32>
    %6 = vector.multi_reduction <add>, %5, %cst_6 [1] : vector<5x32xf32> to vector<5xf32>
    %7 = vector.shape_cast %6 : vector<5xf32> to vector<5x1xf32>
    %cst_7 = arith.constant 3.200000e+01 : f32
    %8 = vector.broadcast %cst_7 : f32 to vector<5x1xf32>
    %9 = arith.divf %7, %8 : vector<5x1xf32>
    %10 = vector.broadcast %9 : vector<5x1xf32> to vector<5x32xf32>
    %11 = arith.subf %5, %10 : vector<5x32xf32>
    %12 = arith.mulf %11, %11 : vector<5x32xf32>
    %cst_8 = arith.constant dense<0.000000e+00> : vector<5xf32>
    %13 = vector.multi_reduction <add>, %12, %cst_8 [1] : vector<5x32xf32> to vector<5xf32>
    %14 = vector.shape_cast %13 : vector<5xf32> to vector<5x1xf32>
    %cst_9 = arith.constant 3.200000e+01 : f32
    %15 = vector.broadcast %cst_9 : f32 to vector<5x1xf32>
    %16 = arith.divf %14, %15 : vector<5x1xf32>
    %cst_10 = arith.constant 9.99999997E-7 : f32
    %17 = vector.broadcast %cst_10 : f32 to vector<5x1xf32>
    %18 = arith.addf %16, %17 : vector<5x1xf32>
    %19 = math.rsqrt %18 : vector<5x1xf32>
    %20 = vector.broadcast %19 : vector<5x1xf32> to vector<5x32xf32>
    %21 = arith.mulf %11, %20 : vector<5x32xf32>
    %c0_11 = arith.constant 0 : index
    %c0_12 = arith.constant 0 : index
    %22 = vector.load %arg4[%c0_11, %c0_12] : memref<1x32xf32, #tpu.memory_space<vmem>>, vector<1x32xf32>
    %23 = vector.broadcast %22 : vector<1x32xf32> to vector<5x32xf32>
    %24 = arith.mulf %21, %23 : vector<5x32xf32>
    %c0_13 = arith.constant 0 : index
    %c0_14 = arith.constant 0 : index
    %25 = vector.load %arg5[%c0_13, %c0_14] : memref<1x32xf32, #tpu.memory_space<vmem>>, vector<1x32xf32>
    %26 = vector.broadcast %25 : vector<1x32xf32> to vector<5x32xf32>
    %27 = arith.addf %24, %26 : vector<5x32xf32>
    %c0_15 = arith.constant 0 : index
    %c0_16 = arith.constant 0 : index
    %28 = vector.load %arg6[%c0_15, %c0_16] : memref<32x96xf32, #tpu.memory_space<vmem>>, vector<32x96xf32>
    %cst_17 = arith.constant dense<0.000000e+00> : vector<5x96xf32>
    %29 = tpu.matmul %27, %28, %cst_17 {dimension_numbers = #tpu.dot_dimension_numbers<[1], [0], [0], [1], [0, 0, 1, 1], [], []>} : vector<5x32xf32>, vector<32x96xf32>, vector<5x96xf32> -> vector<5x96xf32>
    %c0_18 = arith.constant 0 : index
    %c0_19 = arith.constant 0 : index
    %30 = vector.load %arg7[%c0_18, %c0_19] : memref<1x96xf32, #tpu.memory_space<vmem>>, vector<1x96xf32>
    %31 = vector.broadcast %30 : vector<1x96xf32> to vector<5x96xf32>
    %32 = arith.addf %29, %31 : vector<5x96xf32>
    %c0_20 = arith.constant 0 : index
    %c0_21 = arith.constant 0 : index
    %33 = vector.load %arg22[%c0_20, %c0_21] : memref<5x96xf32, #tpu.memory_space<vmem>>, vector<5x96xf32>
    tpu.vector_store %arg22[%c0_20, %c0_21], %32 {strides = array<i32>} : memref<5x96xf32, #tpu.memory_space<vmem>>, vector<5x96xf32>,
    %cst_22 = arith.constant 0.000000e+00 : f32
    %34 = vector.broadcast %cst_22 : f32 to vector<5x32xf32>
    %c0_23 = arith.constant 0 : index
    %c0_24 = arith.constant 0 : index
    %35 = vector.load %arg22[%c0_23, %c0_24] : memref<5x96xf32, #tpu.memory_space<vmem>>, vector<5x16xf32>
    %c0_25 = arith.constant 0 : index
    %c32 = arith.constant 32 : index
    %36 = vector.load %arg22[%c0_25, %c32] : memref<5x96xf32, #tpu.memory_space<vmem>>, vector<5x16xf32>
    %c0_26 = arith.constant 0 : index
    %c64 = arith.constant 64 : index
    %37 = vector.load %arg22[%c0_26, %c64] : memref<5x96xf32, #tpu.memory_space<vmem>>, vector<5x16xf32>
    %cst_27 = arith.constant dense<0.000000e+00> : vector<5x5xf32>
    %38 = tpu.matmul %35, %36, %cst_27 {dimension_numbers = #tpu.dot_dimension_numbers<[1], [1], [0], [0], [0, 0, 1, 0], [], []>} : vector<5x16xf32>, vector<5x16xf32>, vector<5x5xf32> -> vector<5x5xf32>
    %cst_28 = arith.constant 2.500000e-01 : f32
    %39 = vector.broadcast %cst_28 : f32 to vector<5x5xf32>
    %40 = arith.mulf %38, %39 : vector<5x5xf32>
    %cst_29 = arith.constant dense<0xFF800000> : vector<5xf32>
    %41 = vector.multi_reduction <maximumf>, %40, %cst_29 [1] : vector<5x5xf32> to vector<5xf32>
    %42 = vector.shape_cast %41 : vector<5xf32> to vector<5x1xf32>
    %43 = vector.broadcast %42 : vector<5x1xf32> to vector<5x5xf32>
    %44 = arith.subf %40, %43 : vector<5x5xf32>
    %45 = math.exp %44 : vector<5x5xf32>
    %cst_30 = arith.constant dense<0.000000e+00> : vector<5xf32>
    %46 = vector.multi_reduction <add>, %45, %cst_30 [1] : vector<5x5xf32> to vector<5xf32>
    %47 = vector.shape_cast %46 : vector<5xf32> to vector<5x1xf32>
    %48 = tpu.reciprocal %47 {approx = true} : vector<5x1xf32> -> vector<5x1xf32>
    %49 = vector.broadcast %48 : vector<5x1xf32> to vector<5x5xf32>
    %50 = arith.mulf %45, %49 : vector<5x5xf32>
    %cst_31 = arith.constant dense<0.000000e+00> : vector<5x16xf32>
    %51 = tpu.matmul %50, %37, %cst_31 {dimension_numbers = #tpu.dot_dimension_numbers<[1], [0], [0], [1], [0, 0, 1, 1], [], []>} : vector<5x5xf32>, vector<5x16xf32>, vector<5x16xf32> -> vector<5x16xf32>
    %c0_32 = arith.constant 0 : index
    %c0_33 = arith.constant 0 : index
    %52 = vector.load %arg8[%c0_32, %c0_33] : memref<32x32xf32, #tpu.memory_space<vmem>>, vector<16x32xf32>
    %cst_34 = arith.constant dense<0.000000e+00> : vector<5x32xf32>
    %53 = tpu.matmul %51, %52, %cst_34 {dimension_numbers = #tpu.dot_dimension_numbers<[1], [0], [0], [1], [0, 0, 1, 1], [], []>} : vector<5x16xf32>, vector<16x32xf32>, vector<5x32xf32> -> vector<5x32xf32>
    %54 = arith.addf %34, %53 : vector<5x32xf32>
    %c0_35 = arith.constant 0 : index
    %c16 = arith.constant 16 : index
    %55 = vector.load %arg22[%c0_35, %c16] : memref<5x96xf32, #tpu.memory_space<vmem>>, vector<5x16xf32>
    %c0_36 = arith.constant 0 : index
    %c48 = arith.constant 48 : index
    %56 = vector.load %arg22[%c0_36, %c48] : memref<5x96xf32, #tpu.memory_space<vmem>>, vector<5x16xf32>
    %c0_37 = arith.constant 0 : index
    %c80 = arith.constant 80 : index
    %57 = vector.load %arg22[%c0_37, %c80] : memref<5x96xf32, #tpu.memory_space<vmem>>, vector<5x16xf32>
    %cst_38 = arith.constant dense<0.000000e+00> : vector<5x5xf32>
    %58 = tpu.matmul %55, %56, %cst_38 {dimension_numbers = #tpu.dot_dimension_numbers<[1], [1], [0], [0], [0, 0, 1, 0], [], []>} : vector<5x16xf32>, vector<5x16xf32>, vector<5x5xf32> -> vector<5x5xf32>
    %cst_39 = arith.constant 2.500000e-01 : f32
    %59 = vector.broadcast %cst_39 : f32 to vector<5x5xf32>
    %60 = arith.mulf %58, %59 : vector<5x5xf32>
    %cst_40 = arith.constant dense<0xFF800000> : vector<5xf32>
    %61 = vector.multi_reduction <maximumf>, %60, %cst_40 [1] : vector<5x5xf32> to vector<5xf32>
    %62 = vector.shape_cast %61 : vector<5xf32> to vector<5x1xf32>
    %63 = vector.broadcast %62 : vector<5x1xf32> to vector<5x5xf32>
    %64 = arith.subf %60, %63 : vector<5x5xf32>
    %65 = math.exp %64 : vector<5x5xf32>
    %cst_41 = arith.constant dense<0.000000e+00> : vector<5xf32>
    %66 = vector.multi_reduction <add>, %65, %cst_41 [1] : vector<5x5xf32> to vector<5xf32>
    %67 = vector.shape_cast %66 : vector<5xf32> to vector<5x1xf32>
    %68 = tpu.reciprocal %67 {approx = true} : vector<5x1xf32> -> vector<5x1xf32>
    %69 = vector.broadcast %68 : vector<5x1xf32> to vector<5x5xf32>
    %70 = arith.mulf %65, %69 : vector<5x5xf32>
    %cst_42 = arith.constant dense<0.000000e+00> : vector<5x16xf32>
    %71 = tpu.matmul %70, %57, %cst_42 {dimension_numbers = #tpu.dot_dimension_numbers<[1], [0], [0], [1], [0, 0, 1, 1], [], []>} : vector<5x5xf32>, vector<5x16xf32>, vector<5x16xf32> -> vector<5x16xf32>
    %c16_43 = arith.constant 16 : index
    %c0_44 = arith.constant 0 : index
    %72 = vector.load %arg8[%c16_43, %c0_44] : memref<32x32xf32, #tpu.memory_space<vmem>>, vector<16x32xf32>
    %cst_45 = arith.constant dense<0.000000e+00> : vector<5x32xf32>
    %73 = tpu.matmul %71, %72, %cst_45 {dimension_numbers = #tpu.dot_dimension_numbers<[1], [0], [0], [1], [0, 0, 1, 1], [], []>} : vector<5x16xf32>, vector<16x32xf32>, vector<5x32xf32> -> vector<5x32xf32>
    %74 = arith.addf %54, %73 : vector<5x32xf32>
    %75 = arith.addf %5, %74 : vector<5x32xf32>
    %c0_46 = arith.constant 0 : index
    %c0_47 = arith.constant 0 : index
    %76 = vector.load %arg9[%c0_46, %c0_47] : memref<1x32xf32, #tpu.memory_space<vmem>>, vector<1x32xf32>
    %77 = vector.broadcast %76 : vector<1x32xf32> to vector<5x32xf32>
    %78 = arith.addf %75, %77 : vector<5x32xf32>
    %cst_48 = arith.constant dense<0.000000e+00> : vector<5xf32>
    %79 = vector.multi_reduction <add>, %78, %cst_48 [1] : vector<5x32xf32> to vector<5xf32>
    %80 = vector.shape_cast %79 : vector<5xf32> to vector<5x1xf32>
    %cst_49 = arith.constant 3.200000e+01 : f32
    %81 = vector.broadcast %cst_49 : f32 to vector<5x1xf32>
    %82 = arith.divf %80, %81 : vector<5x1xf32>
    %83 = vector.broadcast %82 : vector<5x1xf32> to vector<5x32xf32>
    %84 = arith.subf %78, %83 : vector<5x32xf32>
    %85 = arith.mulf %84, %84 : vector<5x32xf32>
    %cst_50 = arith.constant dense<0.000000e+00> : vector<5xf32>
    %86 = vector.multi_reduction <add>, %85, %cst_50 [1] : vector<5x32xf32> to vector<5xf32>
    %87 = vector.shape_cast %86 : vector<5xf32> to vector<5x1xf32>
    %cst_51 = arith.constant 3.200000e+01 : f32
    %88 = vector.broadcast %cst_51 : f32 to vector<5x1xf32>
    %89 = arith.divf %87, %88 : vector<5x1xf32>
    %cst_52 = arith.constant 9.99999997E-7 : f32
    %90 = vector.broadcast %cst_52 : f32 to vector<5x1xf32>
    %91 = arith.addf %89, %90 : vector<5x1xf32>
    %92 = math.rsqrt %91 : vector<5x1xf32>
    %93 = vector.broadcast %92 : vector<5x1xf32> to vector<5x32xf32>
    %94 = arith.mulf %84, %93 : vector<5x32xf32>
    %c0_53 = arith.constant 0 : index
    %c0_54 = arith.constant 0 : index
    %95 = vector.load %arg10[%c0_53, %c0_54] : memref<1x32xf32, #tpu.memory_space<vmem>>, vector<1x32xf32>
    %96 = vector.broadcast %95 : vector<1x32xf32> to vector<5x32xf32>
    %97 = arith.mulf %94, %96 : vector<5x32xf32>
    %c0_55 = arith.constant 0 : index
    %c0_56 = arith.constant 0 : index
    %98 = vector.load %arg11[%c0_55, %c0_56] : memref<1x32xf32, #tpu.memory_space<vmem>>, vector<1x32xf32>
    %99 = vector.broadcast %98 : vector<1x32xf32> to vector<5x32xf32>
    %100 = arith.addf %97, %99 : vector<5x32xf32>
    %c0_57 = arith.constant 0 : index
    %c0_58 = arith.constant 0 : index
    %101 = vector.load %arg12[%c0_57, %c0_58] : memref<32x128xf32, #tpu.memory_space<vmem>>, vector<32x128xf32>
    %cst_59 = arith.constant dense<0.000000e+00> : vector<5x128xf32>
    %102 = tpu.matmul %100, %101, %cst_59 {dimension_numbers = #tpu.dot_dimension_numbers<[1], [0], [0], [1], [0, 0, 1, 1], [], []>} : vector<5x32xf32>, vector<32x128xf32>, vector<5x128xf32> -> vector<5x128xf32>
    %c0_60 = arith.constant 0 : index
    %c0_61 = arith.constant 0 : index
    %103 = vector.load %arg13[%c0_60, %c0_61] : memref<1x128xf32, #tpu.memory_space<vmem>>, vector<1x128xf32>
    %104 = vector.broadcast %103 : vector<1x128xf32> to vector<5x128xf32>
    %105 = arith.addf %102, %104 : vector<5x128xf32>
    %cst_62 = arith.constant 5.000000e-01 : f32
    %106 = vector.broadcast %cst_62 : f32 to vector<5x128xf32>
    %107 = arith.mulf %106, %105 : vector<5x128xf32>
    %cst_63 = arith.constant 0.707106769 : f32
    %108 = vector.broadcast %cst_63 : f32 to vector<5x128xf32>
    %109 = arith.mulf %105, %108 : vector<5x128xf32>
    %110 = math.erf %109 : vector<5x128xf32>
    %cst_64 = arith.constant 1.000000e+00 : f32
    %111 = vector.broadcast %cst_64 : f32 to vector<5x128xf32>
    %112 = arith.addf %111, %110 : vector<5x128xf32>
    %113 = arith.mulf %107, %112 : vector<5x128xf32>
    %c0_65 = arith.constant 0 : index
    %c0_66 = arith.constant 0 : index
    %114 = vector.load %arg14[%c0_65, %c0_66] : memref<128x32xf32, #tpu.memory_space<vmem>>, vector<128x32xf32>
    %cst_67 = arith.constant dense<0.000000e+00> : vector<5x32xf32>
    %115 = tpu.matmul %113, %114, %cst_67 {dimension_numbers = #tpu.dot_dimension_numbers<[1], [0], [0], [1], [0, 0, 1, 1], [], []>} : vector<5x128xf32>, vector<128x32xf32>, vector<5x32xf32> -> vector<5x32xf32>
    %116 = arith.addf %78, %115 : vector<5x32xf32>
    %c0_68 = arith.constant 0 : index
    %c0_69 = arith.constant 0 : index
    %117 = vector.load %arg15[%c0_68, %c0_69] : memref<1x32xf32, #tpu.memory_space<vmem>>, vector<1x32xf32>
    %118 = vector.broadcast %117 : vector<1x32xf32> to vector<5x32xf32>
    %119 = arith.addf %116, %118 : vector<5x32xf32>
    %cst_70 = arith.constant dense<0.000000e+00> : vector<5xf32>
    %120 = vector.multi_reduction <add>, %119, %cst_70 [1] : vector<5x32xf32> to vector<5xf32>
    %121 = vector.shape_cast %120 : vector<5xf32> to vector<5x1xf32>
    %cst_71 = arith.constant 3.200000e+01 : f32
    %122 = vector.broadcast %cst_71 : f32 to vector<5x1xf32>
    %123 = arith.divf %121, %122 : vector<5x1xf32>
    %124 = vector.broadcast %123 : vector<5x1xf32> to vector<5x32xf32>
    %125 = arith.subf %119, %124 : vector<5x32xf32>
    %126 = arith.mulf %125, %125 : vector<5x32xf32>
    %cst_72 = arith.constant dense<0.000000e+00> : vector<5xf32>
    %127 = vector.multi_reduction <add>, %126, %cst_72 [1] : vector<5x32xf32> to vector<5xf32>
    %128 = vector.shape_cast %127 : vector<5xf32> to vector<5x1xf32>
    %cst_73 = arith.constant 3.200000e+01 : f32
    %129 = vector.broadcast %cst_73 : f32 to vector<5x1xf32>
    %130 = arith.divf %128, %129 : vector<5x1xf32>
    %cst_74 = arith.constant 9.99999997E-7 : f32
    %131 = vector.broadcast %cst_74 : f32 to vector<5x1xf32>
    %132 = arith.addf %130, %131 : vector<5x1xf32>
    %133 = math.rsqrt %132 : vector<5x1xf32>
    %134 = vector.broadcast %133 : vector<5x1xf32> to vector<5x32xf32>
    %135 = arith.mulf %125, %134 : vector<5x32xf32>
    %c0_75 = arith.constant 0 : index
    %c0_76 = arith.constant 0 : index
    %136 = vector.load %arg16[%c0_75, %c0_76] : memref<1x32xf32, #tpu.memory_space<vmem>>, vector<1x32xf32>
    %137 = vector.broadcast %136 : vector<1x32xf32> to vector<5x32xf32>
    %138 = arith.mulf %135, %137 : vector<5x32xf32>
    %c0_77 = arith.constant 0 : index
    %c0_78 = arith.constant 0 : index
    %139 = vector.load %arg17[%c0_77, %c0_78] : memref<1x32xf32, #tpu.memory_space<vmem>>, vector<1x32xf32>
    %140 = vector.broadcast %139 : vector<1x32xf32> to vector<5x32xf32>
    %141 = arith.addf %138, %140 : vector<5x32xf32>
    %c0_79 = arith.constant 0 : index
    %c0_80 = arith.constant 0 : index
    %142 = vector.load %arg18[%c0_79, %c0_80] : memref<4x32xf32, #tpu.memory_space<vmem>>, vector<4x32xf32>
    %cst_81 = arith.constant dense<0.000000e+00> : vector<4x5xf32>
    %143 = tpu.matmul %142, %141, %cst_81 {dimension_numbers = #tpu.dot_dimension_numbers<[1], [1], [0], [0], [0, 0, 1, 0], [], []>} : vector<4x32xf32>, vector<5x32xf32>, vector<4x5xf32> -> vector<4x5xf32>
    %c0_82 = arith.constant 0 : index
    %c0_83 = arith.constant 0 : index
    %144 = vector.load %arg19[%c0_82, %c0_83] : memref<4x1xf32, #tpu.memory_space<vmem>>, vector<4x1xf32>
    %145 = vector.broadcast %144 : vector<4x1xf32> to vector<4x5xf32>
    %146 = arith.addf %143, %145 : vector<4x5xf32>
    %c0_84 = arith.constant 0 : index
    %c0_85 = arith.constant 0 : index
    %147 = vector.load %arg20[%c0_84, %c0_85] : memref<5x256xf32, #tpu.memory_space<vmem>>, vector<5x256xf32>
    %cst_86 = arith.constant dense<0.000000e+00> : vector<4x256xf32>
    %148 = tpu.matmul %146, %147, %cst_86 {dimension_numbers = #tpu.dot_dimension_numbers<[1], [0], [0], [1], [0, 0, 1, 1], [], []>} : vector<4x5xf32>, vector<5x256xf32>, vector<4x256xf32> -> vector<4x256xf32>
    %c0_87 = arith.constant 0 : index
    %c0_88 = arith.constant 0 : index
    %c0_89 = arith.constant 0 : index
    %149 = vector.load %arg21[%c0_87, %c0_88, %c0_89] : memref<1x4x256xf32, #tpu.memory_space<vmem>>, vector<1x4x256xf32>
    %150 = vector.shape_cast %149 : vector<1x4x256xf32> to vector<4x256xf32>
    %151 = vector.shape_cast %148 : vector<4x256xf32> to vector<1x4x256xf32>
    tpu.vector_store %arg21[%c0_87, %c0_88, %c0_89], %151 {strides = array<i32>} : memref<1x4x256xf32, #tpu.memory_space<vmem>>, vector<1x4x256xf32>,
    return
  }
  func.func @transform_0(%arg0: i32) -> (i32, i32, i32) {
    %c0_i32 = arith.constant 0 : i32
    %c0_i32_0 = arith.constant 0 : i32
    %c0_i32_1 = arith.constant 0 : i32
    return %arg0, %c0_i32, %c0_i32_0 : i32, i32, i32
  }
  func.func @transform_1(%arg0: i32) -> (i32, i32) {
    %c0_i32 = arith.constant 0 : i32
    %c0_i32_0 = arith.constant 0 : i32
    %c0_i32_1 = arith.constant 0 : i32
    return %c0_i32, %c0_i32_0 : i32, i32
  }
  func.func @transform_2(%arg0: i32) -> (i32, i32) {
    %c0_i32 = arith.constant 0 : i32
    %c0_i32_0 = arith.constant 0 : i32
    %c0_i32_1 = arith.constant 0 : i32
    return %c0_i32, %c0_i32_0 : i32, i32
  }
  func.func @transform_3(%arg0: i32) -> (i32, i32) {
    %c0_i32 = arith.constant 0 : i32
    %c0_i32_0 = arith.constant 0 : i32
    %c0_i32_1 = arith.constant 0 : i32
    return %c0_i32, %c0_i32_0 : i32, i32
  }
  func.func @transform_4(%arg0: i32) -> (i32, i32) {
    %c0_i32 = arith.constant 0 : i32
    %c0_i32_0 = arith.constant 0 : i32
    %c0_i32_1 = arith.constant 0 : i32
    return %c0_i32, %c0_i32_0 : i32, i32
  }
  func.func @transform_5(%arg0: i32) -> (i32, i32) {
    %c0_i32 = arith.constant 0 : i32
    %c0_i32_0 = arith.constant 0 : i32
    %c0_i32_1 = arith.constant 0 : i32
    return %c0_i32, %c0_i32_0 : i32, i32
  }
  func.func @transform_6(%arg0: i32) -> (i32, i32) {
    %c0_i32 = arith.constant 0 : i32
    %c0_i32_0 = arith.constant 0 : i32
    %c0_i32_1 = arith.constant 0 : i32
    return %c0_i32, %c0_i32_0 : i32, i32
  }
  func.func @transform_7(%arg0: i32) -> (i32, i32) {
    %c0_i32 = arith.constant 0 : i32
    %c0_i32_0 = arith.constant 0 : i32
    %c0_i32_1 = arith.constant 0 : i32
    return %c0_i32, %c0_i32_0 : i32, i32
  }
  func.func @transform_8(%arg0: i32) -> (i32, i32) {
    %c0_i32 = arith.constant 0 : i32
    %c0_i32_0 = arith.constant 0 : i32
    %c0_i32_1 = arith.constant 0 : i32
    return %c0_i32, %c0_i32_0 : i32, i32
  }
  func.func @transform_9(%arg0: i32) -> (i32, i32) {
    %c0_i32 = arith.constant 0 : i32
    %c0_i32_0 = arith.constant 0 : i32
    %c0_i32_1 = arith.constant 0 : i32
    return %c0_i32, %c0_i32_0 : i32, i32
  }
  func.func @transform_10(%arg0: i32) -> (i32, i32) {
    %c0_i32 = arith.constant 0 : i32
    %c0_i32_0 = arith.constant 0 : i32
    %c0_i32_1 = arith.constant 0 : i32
    return %c0_i32, %c0_i32_0 : i32, i32
  }
  func.func @transform_11(%arg0: i32) -> (i32, i32) {
    %c0_i32 = arith.constant 0 : i32
    %c0_i32_0 = arith.constant 0 : i32
    %c0_i32_1 = arith.constant 0 : i32
    return %c0_i32, %c0_i32_0 : i32, i32
  }
  func.func @transform_12(%arg0: i32) -> (i32, i32) {
    %c0_i32 = arith.constant 0 : i32
    %c0_i32_0 = arith.constant 0 : i32
    %c0_i32_1 = arith.constant 0 : i32
    return %c0_i32, %c0_i32_0 : i32, i32
  }
  func.func @transform_13(%arg0: i32) -> (i32, i32) {
    %c0_i32 = arith.constant 0 : i32
    %c0_i32_0 = arith.constant 0 : i32
    %c0_i32_1 = arith.constant 0 : i32
    return %c0_i32, %c0_i32_0 : i32, i32
  }
  func.func @transform_14(%arg0: i32) -> (i32, i32) {
    %c0_i32 = arith.constant 0 : i32
    %c0_i32_0 = arith.constant 0 : i32
    %c0_i32_1 = arith.constant 0 : i32
    return %c0_i32, %c0_i32_0 : i32, i32
  }
  func.func @transform_15(%arg0: i32) -> (i32, i32) {
    %c0_i32 = arith.constant 0 : i32
    %c0_i32_0 = arith.constant 0 : i32
    %c0_i32_1 = arith.constant 0 : i32
    return %c0_i32, %c0_i32_0 : i32, i32
  }
  func.func @transform_16(%arg0: i32) -> (i32, i32) {
    %c0_i32 = arith.constant 0 : i32
    %c0_i32_0 = arith.constant 0 : i32
    %c0_i32_1 = arith.constant 0 : i32
    return %c0_i32, %c0_i32_0 : i32, i32
  }
  func.func @transform_17(%arg0: i32) -> (i32, i32) {
    %c0_i32 = arith.constant 0 : i32
    %c0_i32_0 = arith.constant 0 : i32
    %c0_i32_1 = arith.constant 0 : i32
    return %c0_i32, %c0_i32_0 : i32, i32
  }
  func.func @transform_18(%arg0: i32) -> (i32, i32) {
    %c0_i32 = arith.constant 0 : i32
    %c0_i32_0 = arith.constant 0 : i32
    %c0_i32_1 = arith.constant 0 : i32
    return %c0_i32, %c0_i32_0 : i32, i32
  }
  func.func @transform_19(%arg0: i32) -> (i32, i32) {
    %c0_i32 = arith.constant 0 : i32
    %c0_i32_0 = arith.constant 0 : i32
    %c0_i32_1 = arith.constant 0 : i32
    return %c0_i32, %c0_i32_0 : i32, i32
  }
  func.func @transform_20(%arg0: i32) -> (i32, i32, i32) {
    %c0_i32 = arith.constant 0 : i32
    %c0_i32_0 = arith.constant 0 : i32
    %c0_i32_1 = arith.constant 0 : i32
    return %arg0, %c0_i32, %c0_i32_0 : i32, i32, i32
  }
}

</mosaic_0001>

<llo_original>
// kernel: segmenter_forward.1
$region0: #{segmenter_forward.1}
  #allocation0 [shape = 'u32[]', space=smem, size = 0x4, offset = 0x4, fixed_abs, tag = 'smem constant byte address 0x4 - core index']
  #allocation1 [shape = 'u32[144,128]{1,0:T(1,128)}', space=vmem, size = 0x12000, scoped, tag = 'internal scratch']
  #allocation2 [shape = 'f32[5,96]{1,0:T(8,128)}', space=vmem, size = 0x1000, scoped, tag = 'scratch operand']
  %s0 = inlined_call_operand.vmem [shape: f32[2,5,192], index: 0, kind: input, shape index: {}]
  %s1 = inlined_call_operand.vmem [shape: f32[5,32], index: 1, kind: input, shape index: {}]
  %s2 = inlined_call_operand.vmem [shape: f32[192,32], index: 2, kind: input, shape index: {}]
  %s3 = inlined_call_operand.vmem [shape: f32[1,32], index: 3, kind: input, shape index: {}]
  %s4 = inlined_call_operand.vmem [shape: f32[1,32], index: 4, kind: input, shape index: {}]
  %s5 = inlined_call_operand.vmem [shape: f32[32,96], index: 5, kind: input, shape index: {}]
  %s6 = inlined_call_operand.vmem [shape: f32[1,96], index: 6, kind: input, shape index: {}]
  %s7 = inlined_call_operand.vmem [shape: f32[32,32], index: 7, kind: input, shape index: {}]
  %s8 = inlined_call_operand.vmem [shape: f32[1,32], index: 8, kind: input, shape index: {}]
  %s9 = inlined_call_operand.vmem [shape: f32[1,32], index: 9, kind: input, shape index: {}]
  %s10 = inlined_call_operand.vmem [shape: f32[1,32], index: 10, kind: input, shape index: {}]
  %s11 = inlined_call_operand.vmem [shape: f32[32,128], index: 11, kind: input, shape index: {}]
  %s12 = inlined_call_operand.vmem [shape: f32[1,128], index: 12, kind: input, shape index: {}]
  %s13 = inlined_call_operand.vmem [shape: f32[128,32], index: 13, kind: input, shape index: {}]
  %s14 = inlined_call_operand.vmem [shape: f32[1,32], index: 14, kind: input, shape index: {}]
  %s15 = inlined_call_operand.vmem [shape: f32[1,32], index: 15, kind: input, shape index: {}]
  %s16 = inlined_call_operand.vmem [shape: f32[1,32], index: 16, kind: input, shape index: {}]
  %s17 = inlined_call_operand.vmem [shape: f32[4,32], index: 17, kind: input, shape index: {}]
  %s18 = inlined_call_operand.vmem [shape: f32[4,1], index: 18, kind: input, shape index: {}]
  %s19 = inlined_call_operand.vmem [shape: f32[5,256], index: 19, kind: input, shape index: {}]
  %s20 = inlined_call_operand.vmem [shape: f32[2,4,256], index: 20, kind: output, shape index: {}]
  %s21 = sld [smem:[#allocation0]]
  $region113: #{segmenter_forward.1} parent=0
    _
  %s23 = ssub.s32 1, %s21
  %s24 = scalar_select 0, %s23, %s21
  loop: start=0, step=1, limit=4
  $region2: #{segmenter_forward.1} parent=0 // loop_pre_header
    _
  $region3: #{segmenter_forward.1} parent=0 // loop_header
    %s26 = sphi 0, %s30
    %p27 = scmp.ge.s32.totalorder %s26, 4
    %s36 = sphi 0, %s38
    %s39 = sphi 0, %s36
    %s40 = sphi 0, %s39
    %s56 = sphi 0, %s40
    %s60 = sphi 0, %s60
    %s62 = sphi 0, %s60
    %s63 = sphi 0, %s62
    %s77 = sphi 0, %s63
    %s81 = sphi 0, %s81
    %s83 = sphi 0, %s81
    %s84 = sphi 0, %s83
    %s98 = sphi 0, %s84
    %s102 = sphi 0, %s102
    %s104 = sphi 0, %s102
    %s105 = sphi 0, %s104
    %s119 = sphi 0, %s105
    %s123 = sphi 0, %s123
    %s125 = sphi 0, %s123
    %s126 = sphi 0, %s125
    %s140 = sphi 0, %s126
    %s144 = sphi 0, %s144
    %s146 = sphi 0, %s144
    %s147 = sphi 0, %s146
    %s161 = sphi 0, %s147
    %s165 = sphi 0, %s165
    %s167 = sphi 0, %s165
    %s168 = sphi 0, %s167
    %s182 = sphi 0, %s168
    %s186 = sphi 0, %s186
    %s188 = sphi 0, %s186
    %s189 = sphi 0, %s188
    %s203 = sphi 0, %s189
    %s207 = sphi 0, %s207
    %s209 = sphi 0, %s207
    %s210 = sphi 0, %s209
    %s224 = sphi 0, %s210
    %s228 = sphi 0, %s228
    %s230 = sphi 0, %s228
    %s231 = sphi 0, %s230
    %s245 = sphi 0, %s231
    %s249 = sphi 0, %s249
    %s251 = sphi 0, %s249
    %s252 = sphi 0, %s251
    %s266 = sphi 0, %s252
    %s270 = sphi 0, %s270
    %s272 = sphi 0, %s270
    %s273 = sphi 0, %s272
    %s287 = sphi 0, %s273
    %s291 = sphi 0, %s291
    %s293 = sphi 0, %s291
    %s294 = sphi 0, %s293
    %s308 = sphi 0, %s294
    %s312 = sphi 0, %s312
    %s314 = sphi 0, %s312
    %s315 = sphi 0, %s314
    %s329 = sphi 0, %s315
    %s333 = sphi 0, %s333
    %s335 = sphi 0, %s333
    %s336 = sphi 0, %s335
    %s350 = sphi 0, %s336
    %s354 = sphi 0, %s354
    %s356 = sphi 0, %s354
    %s357 = sphi 0, %s356
    %s371 = sphi 0, %s357
    %s375 = sphi 0, %s375
    %s377 = sphi 0, %s375
    %s378 = sphi 0, %s377
    %s392 = sphi 0, %s378
    %s396 = sphi 0, %s396
    %s398 = sphi 0, %s396
    %s399 = sphi 0, %s398
    %s413 = sphi 0, %s399
    %s417 = sphi 0, %s417
    %s419 = sphi 0, %s417
    %s420 = sphi 0, %s419
    %s434 = sphi 0, %s420
    %s438 = sphi 0, %s438
    %s440 = sphi 0, %s438
    %s441 = sphi 0, %s440
    %s455 = sphi 0, %s441
    %s461 = sphi 0, %s463
    %s464 = sphi 0, %s461
    %s465 = sphi 0, %s464
    %s481 = sphi 0, %s465
  $region4: #{segmenter_forward.1} parent=0 // loop_header_branch
    %29 = sbr.rel (%p27) target = $region8
  $region5: #{segmenter_forward.1} parent=0 // loop_body
    %s31 = ssub.s32 %s26, 1
    %s32 = ssub.s32 %s26, 2
    %s33 = sadd.s32 %s26, 1
    %s34 = ssub.s32 %s26, %s33
    %p35 = scmp.eq.s32.totalorder %s34, 0
    %s37 = sadd.s32 %s36, 1
    %s38 = scalar_select %p35, %s36, %s37
    %p41 = pneg %p35
    %p42 = scmp.eq.s32.totalorder %s26, 1
    %p43 = por %p41, %p42
    %p44 = scmp.ne.s32.totalorder %s36, %s39
    %p45 = scmp.eq.s32.totalorder %s26, 0
    %p46 = por %p44, %p45
    %p47 = scmp.ne.s32.totalorder %s36, %s39
    %p48 = scmp.eq.s32.totalorder %s31, 1
    %p49 = por %p47, %p48
    %p50 = scmp.ne.s32.totalorder %s39, %s40
    %p51 = scmp.eq.s32.totalorder %s31, 0
    %p52 = por %p50, %p51
    %p53 = scmp.ne.s32.totalorder %s39, %s40
    %p54 = scmp.eq.s32.totalorder %s32, 1
    %p55 = por %p53, %p54
    %p57 = scmp.ne.s32.totalorder %s40, %s56
    %p58 = scmp.eq.s32.totalorder %s32, 0
    %p59 = por %p57, %p58
    %s61 = sadd.s32 %s60, 1
    %p64 = scmp.eq.s32.totalorder %s26, 1
    %p65 = scmp.ne.s32.totalorder %s60, %s62
    %p66 = scmp.eq.s32.totalorder %s26, 0
    %p67 = por %p65, %p66
    %p68 = scmp.ne.s32.totalorder %s60, %s62
    %p69 = scmp.eq.s32.totalorder %s31, 1
    %p70 = por %p68, %p69
    %p71 = scmp.ne.s32.totalorder %s62, %s63
    %p72 = scmp.eq.s32.totalorder %s31, 0
    %p73 = por %p71, %p72
    %p74 = scmp.ne.s32.totalorder %s62, %s63
    %p75 = scmp.eq.s32.totalorder %s32, 1
    %p76 = por %p74, %p75
    %p78 = scmp.ne.s32.totalorder %s63, %s77
    %p79 = scmp.eq.s32.totalorder %s32, 0
    %p80 = por %p78, %p79
    %s82 = sadd.s32 %s81, 1
    %p85 = scmp.eq.s32.totalorder %s26, 1
    %p86 = scmp.ne.s32.totalorder %s81, %s83
    %p87 = scmp.eq.s32.totalorder %s26, 0
    %p88 = por %p86, %p87
    %p89 = scmp.ne.s32.totalorder %s81, %s83
    %p90 = scmp.eq.s32.totalorder %s31, 1
    %p91 = por %p89, %p90
    %p92 = scmp.ne.s32.totalorder %s83, %s84
    %p93 = scmp.eq.s32.totalorder %s31, 0
    %p94 = por %p92, %p93
    %p95 = scmp.ne.s32.totalorder %s83, %s84
    %p96 = scmp.eq.s32.totalorder %s32, 1
    %p97 = por %p95, %p96
    %p99 = scmp.ne.s32.totalorder %s84, %s98
    %p100 = scmp.eq.s32.totalorder %s32, 0
    %p101 = por %p99, %p100
    %s103 = sadd.s32 %s102, 1
    %p106 = scmp.eq.s32.totalorder %s26, 1
    %p107 = scmp.ne.s32.totalorder %s102, %s104
    %p108 = scmp.eq.s32.totalorder %s26, 0
    %p109 = por %p107, %p108
    %p110 = scmp.ne.s32.totalorder %s102, %s104
    %p111 = scmp.eq.s32.totalorder %s31, 1
    %p112 = por %p110, %p111
    %p113 = scmp.ne.s32.totalorder %s104, %s105
    %p114 = scmp.eq.s32.totalorder %s31, 0
    %p115 = por %p113, %p114
    %p116 = scmp.ne.s32.totalorder %s104, %s105
    %p117 = scmp.eq.s32.totalorder %s32, 1
    %p118 = por %p116, %p117
    %p120 = scmp.ne.s32.totalorder %s105, %s119
    %p121 = scmp.eq.s32.totalorder %s32, 0
    %p122 = por %p120, %p121
    %s124 = sadd.s32 %s123, 1
    %p127 = scmp.eq.s32.totalorder %s26, 1
    %p128 = scmp.ne.s32.totalorder %s123, %s125
    %p129 = scmp.eq.s32.totalorder %s26, 0
    %p130 = por %p128, %p129
    %p131 = scmp.ne.s32.totalorder %s123, %s125
    %p132 = scmp.eq.s32.totalorder %s31, 1
    %p133 = por %p131, %p132
    %p134 = scmp.ne.s32.totalorder %s125, %s126
    %p135 = scmp.eq.s32.totalorder %s31, 0
    %p136 = por %p134, %p135
    %p137 = scmp.ne.s32.totalorder %s125, %s126
    %p138 = scmp.eq.s32.totalorder %s32, 1
    %p139 = por %p137, %p138
    %p141 = scmp.ne.s32.totalorder %s126, %s140
    %p142 = scmp.eq.s32.totalorder %s32, 0
    %p143 = por %p141, %p142
    %s145 = sadd.s32 %s144, 1
    %p148 = scmp.eq.s32.totalorder %s26, 1
    %p149 = scmp.ne.s32.totalorder %s144, %s146
    %p150 = scmp.eq.s32.totalorder %s26, 0
    %p151 = por %p149, %p150
    %p152 = scmp.ne.s32.totalorder %s144, %s146
    %p153 = scmp.eq.s32.totalorder %s31, 1
    %p154 = por %p152, %p153
    %p155 = scmp.ne.s32.totalorder %s146, %s147
    %p156 = scmp.eq.s32.totalorder %s31, 0
    %p157 = por %p155, %p156
    %p158 = scmp.ne.s32.totalorder %s146, %s147
    %p159 = scmp.eq.s32.totalorder %s32, 1
    %p160 = por %p158, %p159
    %p162 = scmp.ne.s32.totalorder %s147, %s161
    %p163 = scmp.eq.s32.totalorder %s32, 0
    %p164 = por %p162, %p163
    %s166 = sadd.s32 %s165, 1
    %p169 = scmp.eq.s32.totalorder %s26, 1
    %p170 = scmp.ne.s32.totalorder %s165, %s167
    %p171 = scmp.eq.s32.totalorder %s26, 0
    %p172 = por %p170, %p171
    %p173 = scmp.ne.s32.totalorder %s165, %s167
    %p174 = scmp.eq.s32.totalorder %s31, 1
    %p175 = por %p173, %p174
    %p176 = scmp.ne.s32.totalorder %s167, %s168
    %p177 = scmp.eq.s32.totalorder %s31, 0
    %p178 = por %p176, %p177
    %p179 = scmp.ne.s32.totalorder %s167, %s168
    %p180 = scmp.eq.s32.totalorder %s32, 1
    %p181 = por %p179, %p180
    %p183 = scmp.ne.s32.totalorder %s168, %s182
    %p184 = scmp.eq.s32.totalorder %s32, 0
    %p185 = por %p183, %p184
    %s187 = sadd.s32 %s186, 1
    %p190 = scmp.eq.s32.totalorder %s26, 1
    %p191 = scmp.ne.s32.totalorder %s186, %s188
    %p192 = scmp.eq.s32.totalorder %s26, 0
    %p193 = por %p191, %p192
    %p194 = scmp.ne.s32.totalorder %s186, %s188
    %p195 = scmp.eq.s32.totalorder %s31, 1
    %p196 = por %p194, %p195
    %p197 = scmp.ne.s32.totalorder %s188, %s189
    %p198 = scmp.eq.s32.totalorder %s31, 0
    %p199 = por %p197, %p198
    %p200 = scmp.ne.s32.totalorder %s188, %s189
    %p201 = scmp.eq.s32.totalorder %s32, 1
    %p202 = por %p200, %p201
    %p204 = scmp.ne.s32.totalorder %s189, %s203
    %p205 = scmp.eq.s32.totalorder %s32, 0
    %p206 = por %p204, %p205
    %s208 = sadd.s32 %s207, 1
    %p211 = scmp.eq.s32.totalorder %s26, 1
    %p212 = scmp.ne.s32.totalorder %s207, %s209
    %p213 = scmp.eq.s32.totalorder %s26, 0
    %p214 = por %p212, %p213
    %p215 = scmp.ne.s32.totalorder %s207, %s209
    %p216 = scmp.eq.s32.totalorder %s31, 1
    %p217 = por %p215, %p216
    %p218 = scmp.ne.s32.totalorder %s209, %s210
    %p219 = scmp.eq.s32.totalorder %s31, 0
    %p220 = por %p218, %p219
    %p221 = scmp.ne.s32.totalorder %s209, %s210
    %p222 = scmp.eq.s32.totalorder %s32, 1
    %p223 = por %p221, %p222
    %p225 = scmp.ne.s32.totalorder %s210, %s224
    %p226 = scmp.eq.s32.totalorder %s32, 0
    %p227 = por %p225, %p226
    %s229 = sadd.s32 %s228, 1
    %p232 = scmp.eq.s32.totalorder %s26, 1
    %p233 = scmp.ne.s32.totalorder %s228, %s230
    %p234 = scmp.eq.s32.totalorder %s26, 0
    %p235 = por %p233, %p234
    %p236 = scmp.ne.s32.totalorder %s228, %s230
    %p237 = scmp.eq.s32.totalorder %s31, 1
    %p238 = por %p236, %p237
    %p239 = scmp.ne.s32.totalorder %s230, %s231
    %p240 = scmp.eq.s32.totalorder %s31, 0
    %p241 = por %p239, %p240
    %p242 = scmp.ne.s32.totalorder %s230, %s231
    %p243 = scmp.eq.s32.totalorder %s32, 1
    %p244 = por %p242, %p243
    %p246 = scmp.ne.s32.totalorder %s231, %s245
    %p247 = scmp.eq.s32.totalorder %s32, 0
    %p248 = por %p246, %p247
    %s250 = sadd.s32 %s249, 1
    %p253 = scmp.eq.s32.totalorder %s26, 1
    %p254 = scmp.ne.s32.totalorder %s249, %s251
    %p255 = scmp.eq.s32.totalorder %s26, 0
    %p256 = por %p254, %p255
    %p257 = scmp.ne.s32.totalorder %s249, %s251
    %p258 = scmp.eq.s32.totalorder %s31, 1
    %p259 = por %p257, %p258
    %p260 = scmp.ne.s32.totalorder %s251, %s252
    %p261 = scmp.eq.s32.totalorder %s31, 0
    %p262 = por %p260, %p261
    %p263 = scmp.ne.s32.totalorder %s251, %s252
    %p264 = scmp.eq.s32.totalorder %s32, 1
    %p265 = por %p263, %p264
    %p267 = scmp.ne.s32.totalorder %s252, %s266
    %p268 = scmp.eq.s32.totalorder %s32, 0
    %p269 = por %p267, %p268
    %s271 = sadd.s32 %s270, 1
    %p274 = scmp.eq.s32.totalorder %s26, 1
    %p275 = scmp.ne.s32.totalorder %s270, %s272
    %p276 = scmp.eq.s32.totalorder %s26, 0
    %p277 = por %p275, %p276
    %p278 = scmp.ne.s32.totalorder %s270, %s272
    %p279 = scmp.eq.s32.totalorder %s31, 1
    %p280 = por %p278, %p279
    %p281 = scmp.ne.s32.totalorder %s272, %s273
    %p282 = scmp.eq.s32.totalorder %s31, 0
    %p283 = por %p281, %p282
    %p284 = scmp.ne.s32.totalorder %s272, %s273
    %p285 = scmp.eq.s32.totalorder %s32, 1
    %p286 = por %p284, %p285
    %p288 = scmp.ne.s32.totalorder %s273, %s287
    %p289 = scmp.eq.s32.totalorder %s32, 0
    %p290 = por %p288, %p289
    %s292 = sadd.s32 %s291, 1
    %p295 = scmp.eq.s32.totalorder %s26, 1
    %p296 = scmp.ne.s32.totalorder %s291, %s293
    %p297 = scmp.eq.s32.totalorder %s26, 0
    %p298 = por %p296, %p297
    %p299 = scmp.ne.s32.totalorder %s291, %s293
    %p300 = scmp.eq.s32.totalorder %s31, 1
    %p301 = por %p299, %p300
    %p302 = scmp.ne.s32.totalorder %s293, %s294
    %p303 = scmp.eq.s32.totalorder %s31, 0
    %p304 = por %p302, %p303
    %p305 = scmp.ne.s32.totalorder %s293, %s294
    %p306 = scmp.eq.s32.totalorder %s32, 1
    %p307 = por %p305, %p306
    %p309 = scmp.ne.s32.totalorder %s294, %s308
    %p310 = scmp.eq.s32.totalorder %s32, 0
    %p311 = por %p309, %p310
    %s313 = sadd.s32 %s312, 1
    %p316 = scmp.eq.s32.totalorder %s26, 1
    %p317 = scmp.ne.s32.totalorder %s312, %s314
    %p318 = scmp.eq.s32.totalorder %s26, 0
    %p319 = por %p317, %p318
    %p320 = scmp.ne.s32.totalorder %s312, %s314
    %p321 = scmp.eq.s32.totalorder %s31, 1
    %p322 = por %p320, %p321
    %p323 = scmp.ne.s32.totalorder %s314, %s315
    %p324 = scmp.eq.s32.totalorder %s31, 0
    %p325 = por %p323, %p324
    %p326 = scmp.ne.s32.totalorder %s314, %s315
    %p327 = scmp.eq.s32.totalorder %s32, 1
    %p328 = por %p326, %p327
    %p330 = scmp.ne.s32.totalorder %s315, %s329
    %p331 = scmp.eq.s32.totalorder %s32, 0
    %p332 = por %p330, %p331
    %s334 = sadd.s32 %s333, 1
    %p337 = scmp.eq.s32.totalorder %s26, 1
    %p338 = scmp.ne.s32.totalorder %s333, %s335
    %p339 = scmp.eq.s32.totalorder %s26, 0
    %p340 = por %p338, %p339
    %p341 = scmp.ne.s32.totalorder %s333, %s335
    %p342 = scmp.eq.s32.totalorder %s31, 1
    %p343 = por %p341, %p342
    %p344 = scmp.ne.s32.totalorder %s335, %s336
    %p345 = scmp.eq.s32.totalorder %s31, 0
    %p346 = por %p344, %p345
    %p347 = scmp.ne.s32.totalorder %s335, %s336
    %p348 = scmp.eq.s32.totalorder %s32, 1
    %p349 = por %p347, %p348
    %p351 = scmp.ne.s32.totalorder %s336, %s350
    %p352 = scmp.eq.s32.totalorder %s32, 0
    %p353 = por %p351, %p352
    %s355 = sadd.s32 %s354, 1
    %p358 = scmp.eq.s32.totalorder %s26, 1
    %p359 = scmp.ne.s32.totalorder %s354, %s356
    %p360 = scmp.eq.s32.totalorder %s26, 0
    %p361 = por %p359, %p360
    %p362 = scmp.ne.s32.totalorder %s354, %s356
    %p363 = scmp.eq.s32.totalorder %s31, 1
    %p364 = por %p362, %p363
    %p365 = scmp.ne.s32.totalorder %s356, %s357
    %p366 = scmp.eq.s32.totalorder %s31, 0
    %p367 = por %p365, %p366
    %p368 = scmp.ne.s32.totalorder %s356, %s357
    %p369 = scmp.eq.s32.totalorder %s32, 1
    %p370 = por %p368, %p369
    %p372 = scmp.ne.s32.totalorder %s357, %s371
    %p373 = scmp.eq.s32.totalorder %s32, 0
    %p374 = por %p372, %p373
    %s376 = sadd.s32 %s375, 1
    %p379 = scmp.eq.s32.totalorder %s26, 1
    %p380 = scmp.ne.s32.totalorder %s375, %s377
    %p381 = scmp.eq.s32.totalorder %s26, 0
    %p382 = por %p380, %p381
    %p383 = scmp.ne.s32.totalorder %s375, %s377
    %p384 = scmp.eq.s32.totalorder %s31, 1
    %p385 = por %p383, %p384
    %p386 = scmp.ne.s32.totalorder %s377, %s378
    %p387 = scmp.eq.s32.totalorder %s31, 0
    %p388 = por %p386, %p387
    %p389 = scmp.ne.s32.totalorder %s377, %s378
    %p390 = scmp.eq.s32.totalorder %s32, 1
    %p391 = por %p389, %p390
    %p393 = scmp.ne.s32.totalorder %s378, %s392
    %p394 = scmp.eq.s32.totalorder %s32, 0
    %p395 = por %p393, %p394
    %s397 = sadd.s32 %s396, 1
    %p400 = scmp.eq.s32.totalorder %s26, 1
    %p401 = scmp.ne.s32.totalorder %s396, %s398
    %p402 = scmp.eq.s32.totalorder %s26, 0
    %p403 = por %p401, %p402
    %p404 = scmp.ne.s32.totalorder %s396, %s398
    %p405 = scmp.eq.s32.totalorder %s31, 1
    %p406 = por %p404, %p405
    %p407 = scmp.ne.s32.totalorder %s398, %s399
    %p408 = scmp.eq.s32.totalorder %s31, 0
    %p409 = por %p407, %p408
    %p410 = scmp.ne.s32.totalorder %s398, %s399
    %p411 = scmp.eq.s32.totalorder %s32, 1
    %p412 = por %p410, %p411
    %p414 = scmp.ne.s32.totalorder %s399, %s413
    %p415 = scmp.eq.s32.totalorder %s32, 0
    %p416 = por %p414, %p415
    %s418 = sadd.s32 %s417, 1
    %p421 = scmp.eq.s32.totalorder %s26, 1
    %p422 = scmp.ne.s32.totalorder %s417, %s419
    %p423 = scmp.eq.s32.totalorder %s26, 0
    %p424 = por %p422, %p423
    %p425 = scmp.ne.s32.totalorder %s417, %s419
    %p426 = scmp.eq.s32.totalorder %s31, 1
    %p427 = por %p425, %p426
    %p428 = scmp.ne.s32.totalorder %s419, %s420
    %p429 = scmp.eq.s32.totalorder %s31, 0
    %p430 = por %p428, %p429
    %p431 = scmp.ne.s32.totalorder %s419, %s420
    %p432 = scmp.eq.s32.totalorder %s32, 1
    %p433 = por %p431, %p432
    %p435 = scmp.ne.s32.totalorder %s420, %s434
    %p436 = scmp.eq.s32.totalorder %s32, 0
    %p437 = por %p435, %p436
    %s439 = sadd.s32 %s438, 1
    %p442 = scmp.eq.s32.totalorder %s26, 1
    %p443 = scmp.ne.s32.totalorder %s438, %s440
    %p444 = scmp.eq.s32.totalorder %s26, 0
    %p445 = por %p443, %p444
    %p446 = scmp.ne.s32.totalorder %s438, %s440
    %p447 = scmp.eq.s32.totalorder %s31, 1
    %p448 = por %p446, %p447
    %p449 = scmp.ne.s32.totalorder %s440, %s441
    %p450 = scmp.eq.s32.totalorder %s31, 0
    %p451 = por %p449, %p450
    %p452 = scmp.ne.s32.totalorder %s440, %s441
    %p453 = scmp.eq.s32.totalorder %s32, 1
    %p454 = por %p452, %p453
    %p456 = scmp.ne.s32.totalorder %s441, %s455
    %p457 = scmp.eq.s32.totalorder %s32, 0
    %p458 = por %p456, %p457
    %s459 = ssub.s32 %s26, %s33
    %p460 = scmp.eq.s32.totalorder %s459, 0
    %s462 = sadd.s32 %s461, 1
    %s463 = scalar_select %p460, %s461, %s462
    %p466 = pneg %p460
    %p467 = scmp.eq.s32.totalorder %s26, 1
    %p468 = por %p466, %p467
    %p469 = scmp.ne.s32.totalorder %s461, %s464
    %p470 = scmp.eq.s32.totalorder %s26, 0
    %p471 = por %p469, %p470
    %p472 = scmp.ne.s32.totalorder %s461, %s464
    %p473 = scmp.eq.s32.totalorder %s31, 1
    %p474 = por %p472, %p473
    %p475 = scmp.ne.s32.totalorder %s464, %s465
    %p476 = scmp.eq.s32.totalorder %s31, 0
    %p477 = por %p475, %p476
    %p478 = scmp.ne.s32.totalorder %s464, %s465
    %p479 = scmp.eq.s32.totalorder %s32, 1
    %p480 = por %p478, %p479
    %p482 = scmp.ne.s32.totalorder %s465, %s481
    %p483 = scmp.eq.s32.totalorder %s32, 0
    %p484 = por %p482, %p483
    %p485 = scmp.le.s32.totalorder 1, %s26
    %p486 = scmp.lt.s32.totalorder %s26, 3
    %p487 = pnand %p485, %p486
    %p488 = pneg %p487
    // Predicated region
    $region9: #{segmenter_forward.1} parent=5 // pred_check
      _
    $region10: #{segmenter_forward.1} parent=5 // pred_check_branch
      %490 = sbr.rel (%p487) target = $region12
    $region11: #{segmenter_forward.1} parent=5 // pred_region
      %s491 = ssub.s32 %s26, 1
      // Predicated region
      $region13: #{segmenter_forward.1} parent=11 // pred_check
        %p492 = pneg %p73
      $region14: #{segmenter_forward.1} parent=11 // pred_check_branch
        %494 = sbr.rel (%p492) target = $region16
      $region15: #{segmenter_forward.1} parent=11 // pred_region
        _
      $region16: #{segmenter_forward.1} parent=11 // pred_fallthru
        _
      // Predicated region
      $region17: #{segmenter_forward.1} parent=11 // pred_check
        %p495 = pneg %p94
      $region18: #{segmenter_forward.1} parent=11 // pred_check_branch
        %497 = sbr.rel (%p495) target = $region20
      $region19: #{segmenter_forward.1} parent=11 // pred_region
        _
      $region20: #{segmenter_forward.1} parent=11 // pred_fallthru
        _
      // Predicated region
      $region21: #{segmenter_forward.1} parent=11 // pred_check
        %p498 = pneg %p115
      $region22: #{segmenter_forward.1} parent=11 // pred_check_branch
        %500 = sbr.rel (%p498) target = $region24
      $region23: #{segmenter_forward.1} parent=11 // pred_region
        _
      $region24: #{segmenter_forward.1} parent=11 // pred_fallthru
        _
      // Predicated region
      $region25: #{segmenter_forward.1} parent=11 // pred_check
        %p501 = pneg %p136
      $region26: #{segmenter_forward.1} parent=11 // pred_check_branch
        %503 = sbr.rel (%p501) target = $region28
      $region27: #{segmenter_forward.1} parent=11 // pred_region
        _
      $region28: #{segmenter_forward.1} parent=11 // pred_fallthru
        _
      // Predicated region
      $region29: #{segmenter_forward.1} parent=11 // pred_check
        %p504 = pneg %p157
      $region30: #{segmenter_forward.1} parent=11 // pred_check_branch
        %506 = sbr.rel (%p504) target = $region32
      $region31: #{segmenter_forward.1} parent=11 // pred_region
        _
      $region32: #{segmenter_forward.1} parent=11 // pred_fallthru
        _
      // Predicated region
      $region33: #{segmenter_forward.1} parent=11 // pred_check
        %p507 = pneg %p178
      $region34: #{segmenter_forward.1} parent=11 // pred_check_branch
        %509 = sbr.rel (%p507) target = $region36
      $region35: #{segmenter_forward.1} parent=11 // pred_region
        _
      $region36: #{segmenter_forward.1} parent=11 // pred_fallthru
        _
      // Predicated region
      $region37: #{segmenter_forward.1} parent=11 // pred_check
        %p510 = pneg %p199
      $region38: #{segmenter_forward.1} parent=11 // pred_check_branch
        %512 = sbr.rel (%p510) target = $region40
      $region39: #{segmenter_forward.1} parent=11 // pred_region
        _
      $region40: #{segmenter_forward.1} parent=11 // pred_fallthru
        _
      // Predicated region
      $region41: #{segmenter_forward.1} parent=11 // pred_check
        %p513 = pneg %p220
      $region42: #{segmenter_forward.1} parent=11 // pred_check_branch
        %515 = sbr.rel (%p513) target = $region44
      $region43: #{segmenter_forward.1} parent=11 // pred_region
        _
      $region44: #{segmenter_forward.1} parent=11 // pred_fallthru
        _
      // Predicated region
      $region45: #{segmenter_forward.1} parent=11 // pred_check
        %p516 = pneg %p241
      $region46: #{segmenter_forward.1} parent=11 // pred_check_branch
        %518 = sbr.rel (%p516) target = $region48
      $region47: #{segmenter_forward.1} parent=11 // pred_region
        _
      $region48: #{segmenter_forward.1} parent=11 // pred_fallthru
        _
      // Predicated region
      $region49: #{segmenter_forward.1} parent=11 // pred_check
        %p519 = pneg %p262
      $region50: #{segmenter_forward.1} parent=11 // pred_check_branch
        %521 = sbr.rel (%p519) target = $region52
      $region51: #{segmenter_forward.1} parent=11 // pred_region
        _
      $region52: #{segmenter_forward.1} parent=11 // pred_fallthru
        _
      // Predicated region
      $region53: #{segmenter_forward.1} parent=11 // pred_check
        %p522 = pneg %p283
      $region54: #{segmenter_forward.1} parent=11 // pred_check_branch
        %524 = sbr.rel (%p522) target = $region56
      $region55: #{segmenter_forward.1} parent=11 // pred_region
        _
      $region56: #{segmenter_forward.1} parent=11 // pred_fallthru
        _
      // Predicated region
      $region57: #{segmenter_forward.1} parent=11 // pred_check
        %p525 = pneg %p304
      $region58: #{segmenter_forward.1} parent=11 // pred_check_branch
        %527 = sbr.rel (%p525) target = $region60
      $region59: #{segmenter_forward.1} parent=11 // pred_region
        _
      $region60: #{segmenter_forward.1} parent=11 // pred_fallthru
        _
      // Predicated region
      $region61: #{segmenter_forward.1} parent=11 // pred_check
        %p528 = pneg %p325
      $region62: #{segmenter_forward.1} parent=11 // pred_check_branch
        %530 = sbr.rel (%p528) target = $region64
      $region63: #{segmenter_forward.1} parent=11 // pred_region
        _
      $region64: #{segmenter_forward.1} parent=11 // pred_fallthru
        _
      // Predicated region
      $region65: #{segmenter_forward.1} parent=11 // pred_check
        %p531 = pneg %p346
      $region66: #{segmenter_forward.1} parent=11 // pred_check_branch
        %533 = sbr.rel (%p531) target = $region68
      $region67: #{segmenter_forward.1} parent=11 // pred_region
        _
      $region68: #{segmenter_forward.1} parent=11 // pred_fallthru
        _
      // Predicated region
      $region69: #{segmenter_forward.1} parent=11 // pred_check
        %p534 = pneg %p367
      $region70: #{segmenter_forward.1} parent=11 // pred_check_branch
        %536 = sbr.rel (%p534) target = $region72
      $region71: #{segmenter_forward.1} parent=11 // pred_region
        _
      $region72: #{segmenter_forward.1} parent=11 // pred_fallthru
        _
      // Predicated region
      $region73: #{segmenter_forward.1} parent=11 // pred_check
        %p537 = pneg %p388
      $region74: #{segmenter_forward.1} parent=11 // pred_check_branch
        %539 = sbr.rel (%p537) target = $region76
      $region75: #{segmenter_forward.1} parent=11 // pred_region
        _
      $region76: #{segmenter_forward.1} parent=11 // pred_fallthru
        _
      // Predicated region
      $region77: #{segmenter_forward.1} parent=11 // pred_check
        %p540 = pneg %p409
      $region78: #{segmenter_forward.1} parent=11 // pred_check_branch
        %542 = sbr.rel (%p540) target = $region80
      $region79: #{segmenter_forward.1} parent=11 // pred_region
        _
      $region80: #{segmenter_forward.1} parent=11 // pred_fallthru
        _
      // Predicated region
      $region81: #{segmenter_forward.1} parent=11 // pred_check
        %p543 = pneg %p430
      $region82: #{segmenter_forward.1} parent=11 // pred_check_branch
        %545 = sbr.rel (%p543) target = $region84
      $region83: #{segmenter_forward.1} parent=11 // pred_region
        _
      $region84: #{segmenter_forward.1} parent=11 // pred_fallthru
        _
      // Predicated region
      $region85: #{segmenter_forward.1} parent=11 // pred_check
        %p546 = pneg %p451
      $region86: #{segmenter_forward.1} parent=11 // pred_check_branch
        %548 = sbr.rel (%p546) target = $region88
      $region87: #{segmenter_forward.1} parent=11 // pred_region
        _
      $region88: #{segmenter_forward.1} parent=11 // pred_fallthru
        _
    $region12: #{segmenter_forward.1} parent=5 // pred_fallthru
      _
    %p549 = scmp.lt.s32.totalorder %s26, 2
    // Predicated region
    $region89: #{segmenter_forward.1} parent=5 // pred_check
      %p550 = pneg %p549
    $region90: #{segmenter_forward.1} parent=5 // pred_check_branch
      %552 = sbr.rel (%p550) target = $region92
    $region91: #{segmenter_forward.1} parent=5 // pred_region
      // Predicated region
      $region93: #{segmenter_forward.1} parent=91 // pred_check
        %p553 = pneg %p46
      $region94: #{segmenter_forward.1} parent=91 // pred_check_branch
        %555 = sbr.rel (%p553) target = $region96
      $region95: #{segmenter_forward.1} parent=91 // pred_region
        %p556 = scmp.lt.s32.totalorder %s26, 1
        %s557 = scalar_select %p556, %s26, 1
        %s558 = smul.addr %s557, 2
        %s559 = smul.addr %s558, 8
        %s560 = scalar_lea.vmem %s0, %s559
      $region96: #{segmenter_forward.1} parent=91 // pred_fallthru
        _
    $region92: #{segmenter_forward.1} parent=5 // pred_fallthru
      _
    %p561 = scmp.le.s32.totalorder 1, %s26
    %p562 = scmp.lt.s32.totalorder %s26, 3
    %p563 = pnand %p561, %p562
    %p564 = pneg %p563
    // Predicated region
    $region97: #{segmenter_forward.1} parent=5 // pred_check
      _
    $region98: #{segmenter_forward.1} parent=5 // pred_check_branch
      %566 = sbr.rel (%p563) target = $region100
    $region99: #{segmenter_forward.1} parent=5 // pred_region
      %s567 = ssub.s32 %s26, 1
      %p568 = scmp.lt.s32.totalorder %s31, 1
      %s569 = scalar_select %p568, %s31, 1
      %s570 = smul.addr %s569, 2
      %s571 = smul.addr %s570, 8
      %s572 = scalar_lea.vmem %s0, %s571
      %p573 = pneg %p52
      %p574 = pneg %p49
      %p575 = pneg %p73
      %p576 = pneg %p70
      %p577 = pneg %p94
      %p578 = pneg %p91
      %p579 = pneg %p115
      %p580 = pneg %p112
      %p581 = pneg %p136
      %p582 = pneg %p133
      %p583 = pneg %p157
      %p584 = pneg %p154
      %p585 = pneg %p178
      %p586 = pneg %p175
      %p587 = pneg %p199
      %p588 = pneg %p196
      %p589 = pneg %p220
      %p590 = pneg %p217
      %p591 = pneg %p241
      %p592 = pneg %p238
      %p593 = pneg %p262
      %p594 = pneg %p259
      %p595 = pneg %p283
      %p596 = pneg %p280
      %p597 = pneg %p304
      %p598 = pneg %p301
      %p599 = pneg %p325
      %p600 = pneg %p322
      %p601 = pneg %p346
      %p602 = pneg %p343
      %p603 = pneg %p367
      %p604 = pneg %p364
      %p605 = pneg %p388
      %p606 = pneg %p385
      %p607 = pneg %p409
      %p608 = pneg %p406
      %p609 = pneg %p430
      %p610 = pneg %p427
      %p611 = pneg %p451
      %p612 = pneg %p448
      %p613 = pneg %p477
      %p614 = pneg %p474
      %p615 = scmp.lt.s32.totalorder %s31, 1
      %s616 = scalar_select %p615, %s31, 1
      %s617 = smul.addr %s616, 2
      %s618 = smul.addr %s617, 4
      %s619 = scalar_lea.vmem %s20, %s618
      %p620 = scmp.lt.s32.totalorder %s31, 1
      %s621 = scalar_select %p620, %s31, 1
      %s622 = smul.addr %s621, 2
      %s623 = smul.addr %s622, 8
      %s624 = scalar_lea.vmem %s0, %s623
      %p625 = scmp.lt.s32.totalorder %s31, 1
      %s626 = scalar_select %p625, %s31, 1
      %s627 = smul.addr %s626, 2
      %s628 = smul.addr %s627, 4
      %s629 = scalar_lea.vmem %s20, %s628
      %v630 = vld [vmem:[%s624] sm:$0x1f]
      %v631 = vld [vmem:[%s624 + $0x8] sm:$0x1f]
      %v632 = vld [vmem:[%s2] sm:$0xff]
      %v633 = vld [vmem:[%s2 + $0x8] sm:$0xff]
      %v634 = vld [vmem:[%s2 + $0x10] sm:$0xff]
      %v635 = vld [vmem:[%s2 + $0x18] sm:$0xff]
      %v636 = vld [vmem:[%s2 + $0x20] sm:$0xff]
      %v637 = vld [vmem:[%s2 + $0x28] sm:$0xff]
      %v638 = vld [vmem:[%s2 + $0x30] sm:$0xff]
      %v639 = vld [vmem:[%s2 + $0x38] sm:$0xff]
      %v640 = vld [vmem:[%s2 + $0x40] sm:$0xff]
      %v641 = vld [vmem:[%s2 + $0x48] sm:$0xff]
      %v642 = vld [vmem:[%s2 + $0x50] sm:$0xff]
      %v643 = vld [vmem:[%s2 + $0x58] sm:$0xff]
      %v644 = vld [vmem:[%s2 + $0x60] sm:$0xff]
      %v645 = vld [vmem:[%s2 + $0x68] sm:$0xff]
      %v646 = vld [vmem:[%s2 + $0x70] sm:$0xff]
      %v647 = vld [vmem:[%s2 + $0x78] sm:$0xff]
      %v648 = vld [vmem:[%s2 + $0x80] sm:$0xff]
      %v649 = vld [vmem:[%s2 + $0x88] sm:$0xff]
      %v650 = vld [vmem:[%s2 + $0x90] sm:$0xff]
      %v651 = vld [vmem:[%s2 + $0x98] sm:$0xff]
      %v652 = vld [vmem:[%s2 + $0xa0] sm:$0xff]
      %v653 = vld [vmem:[%s2 + $0xa8] sm:$0xff]
      %v654 = vld [vmem:[%s2 + $0xb0] sm:$0xff]
      %v655 = vld [vmem:[%s2 + $0xb8] sm:$0xff]
      %v656 = vld [vmem:[%s1] sm:$0x1f]
      %vm657 = vcmask 523264
      %v659 = vsel %vm657, %v631, 0
      %661 = vmatprep.subr.mxu0 0.0
      %662 = vmatpush1.msra.mxu0 %v632
      %663 = vmatprep.subr.mxu0 0.0
      %664 = vmatpush1.msra.mxu0 %v633
      %665 = vmatprep.subr.mxu0 0.0
      %666 = vmatpush1.msra.mxu0 %v634
      %667 = vmatprep.subr.mxu0 0.0
      %668 = vmatpush1.msra.mxu0 %v635
      %669 = vmatprep.subr.mxu0 0.0
      %670 = vmatpush1.msra.mxu0 %v636
      %671 = vmatprep.subr.mxu0 0.0
      %672 = vmatpush1.msra.mxu0 %v637
      %673 = vmatprep.subr.mxu0 0.0
      %674 = vmatpush1.msra.mxu0 %v638
      %675 = vmatprep.subr.mxu0 0.0
      %676 = vmatpush1.msra.mxu0 %v639
      %677 = vmatprep.subr.mxu0 0.0
      %678 = vmatpush1.msra.mxu0 %v640
      %679 = vmatprep.subr.mxu0 0.0
      %680 = vmatpush1.msra.mxu0 %v641
      %681 = vmatprep.subr.mxu0 0.0
      %682 = vmatpush1.msra.mxu0 %v642
      %683 = vmatprep.subr.mxu0 0.0
      %684 = vmatpush1.msra.mxu0 %v643
      %685 = vmatprep.subr.mxu0 0.0
      %686 = vmatpush1.msra.mxu0 %v644
      %687 = vmatprep.subr.mxu0 0.0
      %688 = vmatpush1.msra.mxu0 %v645
      %689 = vmatprep.subr.mxu0 0.0
      %690 = vmatpush1.msra.mxu0 %v646
      %691 = vmatprep.subr.mxu0 0.0
      %692 = vmatpush1.msra.mxu0 %v647
      %693 = vmatprep.subr.mxu0 0.0
      %694 = vmatpush1.msra.mxu0 %v648
      %695 = vmatprep.subr.mxu0 0.0
      %696 = vmatpush1.msra.mxu0 %v649
      %697 = vmatprep.subr.mxu0 0.0
      %698 = vmatpush1.msra.mxu0 %v650
      %699 = vmatprep.subr.mxu0 0.0
      %700 = vmatpush1.msra.mxu0 %v651
      %701 = vmatprep.subr.mxu0 0.0
      %702 = vmatpush1.msra.mxu0 %v652
      %703 = vmatprep.subr.mxu0 0.0
      %704 = vmatpush1.msra.mxu0 %v653
      %705 = vmatprep.subr.mxu0 0.0
      %706 = vmatpush1.msra.mxu0 %v654
      %707 = vmatprep.subr.mxu0 0.0
      %708 = vmatpush1.msra.mxu0 %v655
      %709 = vmatprep.subr.mxu0 0.0
      %710 = vmatpush1.msra.mxu0 0.0
      %711 = vmatprep.subr.mxu0 0.0
      %712 = vmatpush1.msra.mxu0 0.0
      %713 = vmatprep.subr.mxu0 0.0
      %714 = vmatpush1.msra.mxu0 0.0
      %715 = vmatprep.subr.mxu0 0.0
      %716 = vmatpush1.msra.mxu0 0.0
      %717 = vmatprep.subr.mxu0 0.0
      %718 = vmatpush1.msra.mxu0 0.0
      %719 = vmatprep.subr.mxu0 0.0
      %720 = vmatpush1.msra.mxu0 0.0
      %721 = vmatprep.subr.mxu0 0.0
      %722 = vmatpush1.msra.mxu0 0.0
      %723 = vmatprep.subr.mxu0 0.0
      %724 = vmatpush1.msra.mxu0 0.0
      %725 = vmatprep.mubr.f32.mxu0 %v659
      %726 = vmatmul.mubr.f32.gmra.mrb[0].mxu0 %v630
      %v727 = vpop.f32.mrb[0].mxu0
      %v728 = vadd.f32 %v656, %v727
      %v729 = vpop.f32.mrb[0].mxu0
      %730 = vdwg.mxu0
      %vm731 = vcmask 258048
      %v732 = vsel %vm731, %v728, 0.0
      %733 = vadd.xlane.f32.xlu0 %v732
      %v734 = vpop.xlane.xlu0 %733
      %v735 = vrcp.pop 32.0
      %v736 = vmul.f32 %v734, %v735
      %v737 = vsub.f32 %v728, %v736
      %v738 = vmul.f32 %v737, %v737
      %v739 = vsel %vm731, %v738, 0.0
      %740 = vadd.xlane.f32.xlu0 %v739
      %v741 = vpop.xlane.xlu0 %740
      %v742 = vmul.f32 %v741, %v735
      %v743 = vadd.f32 %v742, 1e-06
      %v744 = vrsqrt.pop %v743
      %v745 = vmul.f32 %v737, %v744
      %v746 = vld [vmem:[%s3] sm:$0x1]
      %v748 = vlaneseq
      %v749 = vshrl.u32 %v748, 7
      %v750 = vsub.s32 0, %v749
      %v751 = vrot.slane %v746, %v750
      %v753 = vmul.f32 %v745, %v751
      %v754 = vld [vmem:[%s4] sm:$0x1]
      %v756 = vlaneseq
      %v757 = vshrl.u32 %v756, 7
      %v758 = vsub.s32 0, %v757
      %v759 = vrot.slane %v754, %v758
      %v761 = vadd.f32 %v753, %v759
      %v762 = vld [vmem:[%s5] sm:$0xff]
      %v763 = vld [vmem:[%s5 + $0x8] sm:$0xff]
      %v764 = vld [vmem:[%s5 + $0x10] sm:$0xff]
      %v765 = vld [vmem:[%s5 + $0x18] sm:$0xff]
      %v766 = vld [vmem:[%s6] sm:$0x1]
      %v768 = vlaneseq
      %v769 = vshrl.u32 %v768, 7
      %v770 = vsub.s32 0, %v769
      %v771 = vrot.slane %v766, %v770
      %vm773 = vcmask 261120
      %v775 = vsel %vm773, %v761, 0
      %777 = vmatprep.subr.mxu0 0.0
      %778 = vmatpush1.msra.mxu0 %v762
      %779 = vmatprep.subr.mxu0 0.0
      %780 = vmatpush1.msra.mxu0 %v763
      %781 = vmatprep.subr.mxu0 0.0
      %782 = vmatpush1.msra.mxu0 %v764
      %783 = vmatprep.subr.mxu0 0.0
      %784 = vmatpush1.msra.mxu0 %v765
      %785 = vmatprep.subr.mxu0 0.0
      %786 = vmatpush1.msra.mxu0 0.0
      %787 = vmatprep.subr.mxu0 0.0
      %788 = vmatpush1.msra.mxu0 0.0
      %789 = vmatprep.subr.mxu0 0.0
      %790 = vmatpush1.msra.mxu0 0.0
      %791 = vmatprep.subr.mxu0 0.0
      %792 = vmatpush1.msra.mxu0 0.0
      %793 = vmatprep.subr.mxu0 0.0
      %794 = vmatpush1.msra.mxu0 0.0
      %795 = vmatprep.subr.mxu0 0.0
      %796 = vmatpush1.msra.mxu0 0.0
      %797 = vmatprep.subr.mxu0 0.0
      %798 = vmatpush1.msra.mxu0 0.0
      %799 = vmatprep.subr.mxu0 0.0
      %800 = vmatpush1.msra.mxu0 0.0
      %801 = vmatprep.subr.mxu0 0.0
      %802 = vmatpush1.msra.mxu0 0.0
      %803 = vmatprep.subr.mxu0 0.0
      %804 = vmatpush1.msra.mxu0 0.0
      %805 = vmatprep.subr.mxu0 0.0
      %806 = vmatpush1.msra.mxu0 0.0
      %807 = vmatprep.subr.mxu0 0.0
      %808 = vmatpush1.msra.mxu0 0.0
      %809 = vmatprep.subr.mxu0 0.0
      %810 = vmatpush1.msra.mxu0 0.0
      %811 = vmatprep.subr.mxu0 0.0
      %812 = vmatpush1.msra.mxu0 0.0
      %813 = vmatprep.subr.mxu0 0.0
      %814 = vmatpush1.msra.mxu0 0.0
      %815 = vmatprep.subr.mxu0 0.0
      %816 = vmatpush1.msra.mxu0 0.0
      %817 = vmatprep.subr.mxu0 0.0
      %818 = vmatpush1.msra.mxu0 0.0
      %819 = vmatprep.subr.mxu0 0.0
      %820 = vmatpush1.msra.mxu0 0.0
      %821 = vmatprep.subr.mxu0 0.0
      %822 = vmatpush1.msra.mxu0 0.0
      %823 = vmatprep.subr.mxu0 0.0
      %824 = vmatpush1.msra.mxu0 0.0
      %825 = vmatprep.subr.mxu0 0.0
      %826 = vmatpush1.msra.mxu0 0.0
      %827 = vmatprep.subr.mxu0 0.0
      %828 = vmatpush1.msra.mxu0 0.0
      %829 = vmatprep.subr.mxu0 0.0
      %830 = vmatpush1.msra.mxu0 0.0
      %831 = vmatprep.subr.mxu0 0.0
      %832 = vmatpush1.msra.mxu0 0.0
      %833 = vmatprep.subr.mxu0 0.0
      %834 = vmatpush1.msra.mxu0 0.0
      %835 = vmatprep.subr.mxu0 0.0
      %836 = vmatpush1.msra.mxu0 0.0
      %837 = vmatprep.subr.mxu0 0.0
      %838 = vmatpush1.msra.mxu0 0.0
      %839 = vmatprep.subr.mxu0 0.0
      %840 = vmatpush1.msra.mxu0 0.0
      %841 = vmatprep.mubr.f32.mxu0 0.0
      %842 = vmatmul.mubr.f32.gmra.mrb[0].mxu0 %v775
      %v843 = vpop.f32.mrb[0].mxu0
      %v844 = vadd.f32 %v771, %v843
      %v845 = vpop.f32.mrb[0].mxu0
      %846 = vdwg.mxu0
      %vm847 = vcmask 782336
      %848 = vst.msk [vmem:[#allocation2] sm:$0x1f] %vm847, %v844
      %v849 = vld [vmem:[#allocation2] sm:$0x1f]
      %851 = vrot.lane.b32.xlu0 %v849, 96
      %v852 = vpop.permute.xlu0 %851
      %vm853 = vcmask 130048
      %v854 = vsel %vm853, %v849, 0
      %v856 = vsel %vm853, %v852, 0
      %858 = vmatprep.subr.mxu0 0.0
      %859 = vmatpush1.xpose.msra.mxu0 %v856
      %860 = vmatprep.subr.mxu0 0.0
      %861 = vmatpush1.xpose.msra.mxu0 0.0
      %862 = vmatprep.subr.mxu0 0.0
      %863 = vmatpush1.xpose.msra.mxu0 0.0
      %864 = vmatprep.subr.mxu0 0.0
      %865 = vmatpush1.xpose.msra.mxu0 0.0
      %866 = vmatprep.subr.mxu0 0.0
      %867 = vmatpush1.xpose.msra.mxu0 0.0
      %868 = vmatprep.subr.mxu0 0.0
      %869 = vmatpush1.xpose.msra.mxu0 0.0
      %870 = vmatprep.subr.mxu0 0.0
      %871 = vmatpush1.xpose.msra.mxu0 0.0
      %872 = vmatprep.subr.mxu0 0.0
      %873 = vmatpush1.xpose.msra.mxu0 0.0
      %874 = vmatprep.subr.mxu0 0.0
      %875 = vmatpush1.xpose.msra.mxu0 0.0
      %876 = vmatprep.subr.mxu0 0.0
      %877 = vmatpush1.xpose.msra.mxu0 0.0
      %878 = vmatprep.subr.mxu0 0.0
      %879 = vmatpush1.xpose.msra.mxu0 0.0
      %880 = vmatprep.subr.mxu0 0.0
      %881 = vmatpush1.xpose.msra.mxu0 0.0
      %882 = vmatprep.subr.mxu0 0.0
      %883 = vmatpush1.xpose.msra.mxu0 0.0
      %884 = vmatprep.subr.mxu0 0.0
      %885 = vmatpush1.xpose.msra.mxu0 0.0
      %886 = vmatprep.subr.mxu0 0.0
      %887 = vmatpush1.xpose.msra.mxu0 0.0
      %888 = vmatprep.subr.mxu0 0.0
      %889 = vmatpush1.xpose.msra.mxu0 0.0
      %890 = vmatprep.subr.mxu0 0.0
      %891 = vmatpush1.xpose.msra.mxu0 0.0
      %892 = vmatprep.subr.mxu0 0.0
      %893 = vmatpush1.xpose.msra.mxu0 0.0
      %894 = vmatprep.subr.mxu0 0.0
      %895 = vmatpush1.xpose.msra.mxu0 0.0
      %896 = vmatprep.subr.mxu0 0.0
      %897 = vmatpush1.xpose.msra.mxu0 0.0
      %898 = vmatprep.subr.mxu0 0.0
      %899 = vmatpush1.xpose.msra.mxu0 0.0
      %900 = vmatprep.subr.mxu0 0.0
      %901 = vmatpush1.xpose.msra.mxu0 0.0
      %902 = vmatprep.subr.mxu0 0.0
      %903 = vmatpush1.xpose.msra.mxu0 0.0
      %904 = vmatprep.subr.mxu0 0.0
      %905 = vmatpush1.xpose.msra.mxu0 0.0
      %906 = vmatprep.subr.mxu0 0.0
      %907 = vmatpush1.xpose.msra.mxu0 0.0
      %908 = vmatprep.subr.mxu0 0.0
      %909 = vmatpush1.xpose.msra.mxu0 0.0
      %910 = vmatprep.subr.mxu0 0.0
      %911 = vmatpush1.xpose.msra.mxu0 0.0
      %912 = vmatprep.subr.mxu0 0.0
      %913 = vmatpush1.xpose.msra.mxu0 0.0
      %914 = vmatprep.subr.mxu0 0.0
      %915 = vmatpush1.xpose.msra.mxu0 0.0
      %916 = vmatprep.subr.mxu0 0.0
      %917 = vmatpush1.xpose.msra.mxu0 0.0
      %918 = vmatprep.subr.mxu0 0.0
      %919 = vmatpush1.xpose.msra.mxu0 0.0
      %920 = vmatprep.subr.mxu0 0.0
      %921 = vmatpush1.xpose.msra.mxu0 0.0
      %922 = vmatprep.mubr.f32.mxu0 0.0
      %923 = vmatmul.mubr.f32.gmra.mrb[0].mxu0 %v854
      %v924 = vpop.f32.mrb[0].mxu0
      %v925 = vadd.f32 0.0, %v924
      %v926 = vpop.f32.mrb[0].mxu0
      %927 = vdwg.mxu0
      %v928 = vmul.f32 %v925, 0.25
      %vm929 = vcmask 36864
      %v930 = vsel %vm929, %v928, -inf
      %931 = vmax.xlane.f32.xlu0 %v930
      %v932 = vpop.xlane.xlu0 %931
      %v933 = vsub.f32 %v928, %v932
      %v934 = vmul.f32 %v933, 1.442695
      %v935 = vpow.pop %v934
      %v936 = vsel %vm929, %v935, 0.0
      %937 = vadd.xlane.f32.xlu0 %v936
      %v938 = vpop.xlane.xlu0 %937
      %v939 = vrcp.pop %v938
      %v940 = vmul.f32 %v935, %v939
      %941 = vrot.lane.b32.xlu0 %v849, 64
      %v942 = vpop.permute.xlu0 %941
      %vm943 = vcmask 39936
      %v945 = vsel %vm943, %v940, 0
      %vm947 = vcmask 1044480
      %v948 = vsel %vm947, %v942, 0
      %950 = vmatprep.subr.mxu0 0.0
      %951 = vmatpush1.msra.mxu0 %v948
      %952 = vmatprep.subr.mxu0 0.0
      %953 = vmatpush1.msra.mxu0 0.0
      %954 = vmatprep.subr.mxu0 0.0
      %955 = vmatpush1.msra.mxu0 0.0
      %956 = vmatprep.subr.mxu0 0.0
      %957 = vmatpush1.msra.mxu0 0.0
      %958 = vmatprep.subr.mxu0 0.0
      %959 = vmatpush1.msra.mxu0 0.0
      %960 = vmatprep.subr.mxu0 0.0
      %961 = vmatpush1.msra.mxu0 0.0
      %962 = vmatprep.subr.mxu0 0.0
      %963 = vmatpush1.msra.mxu0 0.0
      %964 = vmatprep.subr.mxu0 0.0
      %965 = vmatpush1.msra.mxu0 0.0
      %966 = vmatprep.subr.mxu0 0.0
      %967 = vmatpush1.msra.mxu0 0.0
      %968 = vmatprep.subr.mxu0 0.0
      %969 = vmatpush1.msra.mxu0 0.0
      %970 = vmatprep.subr.mxu0 0.0
      %971 = vmatpush1.msra.mxu0 0.0
      %972 = vmatprep.subr.mxu0 0.0
      %973 = vmatpush1.msra.mxu0 0.0
      %974 = vmatprep.subr.mxu0 0.0
      %975 = vmatpush1.msra.mxu0 0.0
      %976 = vmatprep.subr.mxu0 0.0
      %977 = vmatpush1.msra.mxu0 0.0
      %978 = vmatprep.subr.mxu0 0.0
      %979 = vmatpush1.msra.mxu0 0.0
      %980 = vmatprep.subr.mxu0 0.0
      %981 = vmatpush1.msra.mxu0 0.0
      %982 = vmatprep.subr.mxu0 0.0
      %983 = vmatpush1.msra.mxu0 0.0
      %984 = vmatprep.subr.mxu0 0.0
      %985 = vmatpush1.msra.mxu0 0.0
      %986 = vmatprep.subr.mxu0 0.0
      %987 = vmatpush1.msra.mxu0 0.0
      %988 = vmatprep.subr.mxu0 0.0
      %989 = vmatpush1.msra.mxu0 0.0
      %990 = vmatprep.subr.mxu0 0.0
      %991 = vmatpush1.msra.mxu0 0.0
      %992 = vmatprep.subr.mxu0 0.0
      %993 = vmatpush1.msra.mxu0 0.0
      %994 = vmatprep.subr.mxu0 0.0
      %995 = vmatpush1.msra.mxu0 0.0
      %996 = vmatprep.subr.mxu0 0.0
      %997 = vmatpush1.msra.mxu0 0.0
      %998 = vmatprep.subr.mxu0 0.0
      %999 = vmatpush1.msra.mxu0 0.0
      %1000 = vmatprep.subr.mxu0 0.0
      %1001 = vmatpush1.msra.mxu0 0.0
      %1002 = vmatprep.subr.mxu0 0.0
      %1003 = vmatpush1.msra.mxu0 0.0
      %1004 = vmatprep.subr.mxu0 0.0
      %1005 = vmatpush1.msra.mxu0 0.0
      %1006 = vmatprep.subr.mxu0 0.0
      %1007 = vmatpush1.msra.mxu0 0.0
      %1008 = vmatprep.subr.mxu0 0.0
      %1009 = vmatpush1.msra.mxu0 0.0
      %1010 = vmatprep.subr.mxu0 0.0
      %1011 = vmatpush1.msra.mxu0 0.0
      %1012 = vmatprep.subr.mxu0 0.0
      %1013 = vmatpush1.msra.mxu0 0.0
      %1014 = vmatprep.mubr.f32.mxu0 0.0
      %1015 = vmatmul.mubr.f32.gmra.mrb[0].mxu0 %v945
      %v1016 = vpop.f32.mrb[0].mxu0
      %v1017 = vadd.f32 0.0, %v1016
      %v1018 = vpop.f32.mrb[0].mxu0
      %1019 = vdwg.mxu0
      %v1020 = vld [vmem:[%s7] sm:$0xff]
      %v1021 = vld [vmem:[%s7 + $0x8] sm:$0xff]
      %1022 = vrot.lane.b32.xlu0 %v849, 112
      %v1023 = vpop.permute.xlu0 %1022
      %1024 = vrot.lane.b32.xlu0 %v849, 80
      %v1025 = vpop.permute.xlu0 %1024
      %v1026 = vsel %vm853, %v1023, 0
      %v1028 = vsel %vm853, %v1025, 0
      %1030 = vmatprep.subr.mxu0 0.0
      %1031 = vmatpush1.xpose.msra.mxu0 %v1028
      %1032 = vmatprep.subr.mxu0 0.0
      %1033 = vmatpush1.xpose.msra.mxu0 0.0
      %1034 = vmatprep.subr.mxu0 0.0
      %1035 = vmatpush1.xpose.msra.mxu0 0.0
      %1036 = vmatprep.subr.mxu0 0.0
      %1037 = vmatpush1.xpose.msra.mxu0 0.0
      %1038 = vmatprep.subr.mxu0 0.0
      %1039 = vmatpush1.xpose.msra.mxu0 0.0
      %1040 = vmatprep.subr.mxu0 0.0
      %1041 = vmatpush1.xpose.msra.mxu0 0.0
      %1042 = vmatprep.subr.mxu0 0.0
      %1043 = vmatpush1.xpose.msra.mxu0 0.0
      %1044 = vmatprep.subr.mxu0 0.0
      %1045 = vmatpush1.xpose.msra.mxu0 0.0
      %1046 = vmatprep.subr.mxu0 0.0
      %1047 = vmatpush1.xpose.msra.mxu0 0.0
      %1048 = vmatprep.subr.mxu0 0.0
      %1049 = vmatpush1.xpose.msra.mxu0 0.0
      %1050 = vmatprep.subr.mxu0 0.0
      %1051 = vmatpush1.xpose.msra.mxu0 0.0
      %1052 = vmatprep.subr.mxu0 0.0
      %1053 = vmatpush1.xpose.msra.mxu0 0.0
      %1054 = vmatprep.subr.mxu0 0.0
      %1055 = vmatpush1.xpose.msra.mxu0 0.0
      %1056 = vmatprep.subr.mxu0 0.0
      %1057 = vmatpush1.xpose.msra.mxu0 0.0
      %1058 = vmatprep.subr.mxu0 0.0
      %1059 = vmatpush1.xpose.msra.mxu0 0.0
      %1060 = vmatprep.subr.mxu0 0.0
      %1061 = vmatpush1.xpose.msra.mxu0 0.0
      %1062 = vmatprep.subr.mxu0 0.0
      %1063 = vmatpush1.xpose.msra.mxu0 0.0
      %1064 = vmatprep.subr.mxu0 0.0
      %1065 = vmatpush1.xpose.msra.mxu0 0.0
      %1066 = vmatprep.subr.mxu0 0.0
      %1067 = vmatpush1.xpose.msra.mxu0 0.0
      %1068 = vmatprep.subr.mxu0 0.0
      %1069 = vmatpush1.xpose.msra.mxu0 0.0
      %1070 = vmatprep.subr.mxu0 0.0
      %1071 = vmatpush1.xpose.msra.mxu0 0.0
      %1072 = vmatprep.subr.mxu0 0.0
      %1073 = vmatpush1.xpose.msra.mxu0 0.0
      %1074 = vmatprep.subr.mxu0 0.0
      %1075 = vmatpush1.xpose.msra.mxu0 0.0
      %1076 = vmatprep.subr.mxu0 0.0
      %1077 = vmatpush1.xpose.msra.mxu0 0.0
      %1078 = vmatprep.subr.mxu0 0.0
      %1079 = vmatpush1.xpose.msra.mxu0 0.0
      %1080 = vmatprep.subr.mxu0 0.0
      %1081 = vmatpush1.xpose.msra.mxu0 0.0
      %1082 = vmatprep.subr.mxu0 0.0
      %1083 = vmatpush1.xpose.msra.mxu0 0.0
      %1084 = vmatprep.subr.mxu0 0.0
      %1085 = vmatpush1.xpose.msra.mxu0 0.0
      %1086 = vmatprep.subr.mxu0 0.0
      %1087 = vmatpush1.xpose.msra.mxu0 0.0
      %1088 = vmatprep.subr.mxu0 0.0
      %1089 = vmatpush1.xpose.msra.mxu0 0.0
      %1090 = vmatprep.subr.mxu0 0.0
      %1091 = vmatpush1.xpose.msra.mxu0 0.0
      %1092 = vmatprep.subr.mxu0 0.0
      %1093 = vmatpush1.xpose.msra.mxu0 0.0
      %1094 = vmatprep.mubr.f32.mxu0 0.0
      %1095 = vmatmul.mubr.f32.gmra.mrb[0].mxu0 %v1026
      %v1096 = vpop.f32.mrb[0].mxu0
      %v1097 = vadd.f32 0.0, %v1096
      %v1098 = vpop.f32.mrb[0].mxu0
      %1099 = vdwg.mxu0
      %v1100 = vmul.f32 %v1097, 0.25
      %v1101 = vsel %vm929, %v1100, -inf
      %1102 = vmax.xlane.f32.xlu0 %v1101
      %v1103 = vpop.xlane.xlu0 %1102
      %v1104 = vsub.f32 %v1100, %v1103
      %v1105 = vmul.f32 %v1104, 1.442695
      %v1106 = vpow.pop %v1105
      %v1107 = vsel %vm929, %v1106, 0.0
      %1108 = vadd.xlane.f32.xlu0 %v1107
      %v1109 = vpop.xlane.xlu0 %1108
      %v1110 = vrcp.pop %v1109
      %v1111 = vmul.f32 %v1106, %v1110
      %1112 = vrot.lane.b32.xlu0 %v849, 48
      %v1113 = vpop.permute.xlu0 %1112
      %v1115 = vsel %vm943, %v1111, 0
      %v1117 = vsel %vm947, %v1113, 0
      %1119 = vmatprep.subr.mxu0 0.0
      %1120 = vmatpush1.msra.mxu0 %v1117
      %1121 = vmatprep.subr.mxu0 0.0
      %1122 = vmatpush1.msra.mxu0 0.0
      %1123 = vmatprep.subr.mxu0 0.0
      %1124 = vmatpush1.msra.mxu0 0.0
      %1125 = vmatprep.subr.mxu0 0.0
      %1126 = vmatpush1.msra.mxu0 0.0
      %1127 = vmatprep.subr.mxu0 0.0
      %1128 = vmatpush1.msra.mxu0 0.0
      %1129 = vmatprep.subr.mxu0 0.0
      %1130 = vmatpush1.msra.mxu0 0.0
      %1131 = vmatprep.subr.mxu0 0.0
      %1132 = vmatpush1.msra.mxu0 0.0
      %1133 = vmatprep.subr.mxu0 0.0
      %1134 = vmatpush1.msra.mxu0 0.0
      %1135 = vmatprep.subr.mxu0 0.0
      %1136 = vmatpush1.msra.mxu0 0.0
      %1137 = vmatprep.subr.mxu0 0.0
      %1138 = vmatpush1.msra.mxu0 0.0
      %1139 = vmatprep.subr.mxu0 0.0
      %1140 = vmatpush1.msra.mxu0 0.0
      %1141 = vmatprep.subr.mxu0 0.0
      %1142 = vmatpush1.msra.mxu0 0.0
      %1143 = vmatprep.subr.mxu0 0.0
      %1144 = vmatpush1.msra.mxu0 0.0
      %1145 = vmatprep.subr.mxu0 0.0
      %1146 = vmatpush1.msra.mxu0 0.0
      %1147 = vmatprep.subr.mxu0 0.0
      %1148 = vmatpush1.msra.mxu0 0.0
      %1149 = vmatprep.subr.mxu0 0.0
      %1150 = vmatpush1.msra.mxu0 0.0
      %1151 = vmatprep.subr.mxu0 0.0
      %1152 = vmatpush1.msra.mxu0 0.0
      %1153 = vmatprep.subr.mxu0 0.0
      %1154 = vmatpush1.msra.mxu0 0.0
      %1155 = vmatprep.subr.mxu0 0.0
      %1156 = vmatpush1.msra.mxu0 0.0
      %1157 = vmatprep.subr.mxu0 0.0
      %1158 = vmatpush1.msra.mxu0 0.0
      %1159 = vmatprep.subr.mxu0 0.0
      %1160 = vmatpush1.msra.mxu0 0.0
      %1161 = vmatprep.subr.mxu0 0.0
      %1162 = vmatpush1.msra.mxu0 0.0
      %1163 = vmatprep.subr.mxu0 0.0
      %1164 = vmatpush1.msra.mxu0 0.0
      %1165 = vmatprep.subr.mxu0 0.0
      %1166 = vmatpush1.msra.mxu0 0.0
      %1167 = vmatprep.subr.mxu0 0.0
      %1168 = vmatpush1.msra.mxu0 0.0
      %1169 = vmatprep.subr.mxu0 0.0
      %1170 = vmatpush1.msra.mxu0 0.0
      %1171 = vmatprep.subr.mxu0 0.0
      %1172 = vmatpush1.msra.mxu0 0.0
      %1173 = vmatprep.subr.mxu0 0.0
      %1174 = vmatpush1.msra.mxu0 0.0
      %1175 = vmatprep.subr.mxu0 0.0
      %1176 = vmatpush1.msra.mxu0 0.0
      %1177 = vmatprep.subr.mxu0 0.0
      %1178 = vmatpush1.msra.mxu0 0.0
      %1179 = vmatprep.subr.mxu0 0.0
      %1180 = vmatpush1.msra.mxu0 0.0
      %1181 = vmatprep.subr.mxu0 0.0
      %1182 = vmatpush1.msra.mxu0 0.0
      %1183 = vmatprep.mubr.f32.mxu0 0.0
      %1184 = vmatmul.mubr.f32.gmra.mrb[0].mxu0 %v1115
      %v1185 = vpop.f32.mrb[0].mxu0
      %v1186 = vadd.f32 0.0, %v1185
      %v1187 = vpop.f32.mrb[0].mxu0
      %1188 = vdwg.mxu0
      %v1189 = vld [vmem:[%s7 + $0x10] sm:$0xff]
      %v1190 = vld [vmem:[%s7 + $0x18] sm:$0xff]
      %v1192 = vsel %vm853, %v1186, 0
      %1194 = vmatprep.subr.mxu0 0.0
      %1195 = vmatpush1.msra.mxu0 %v1189
      %1196 = vmatprep.subr.mxu0 0.0
      %1197 = vmatpush1.msra.mxu0 %v1190
      %1198 = vmatprep.subr.mxu0 0.0
      %1199 = vmatpush1.msra.mxu0 0.0
      %1200 = vmatprep.subr.mxu0 0.0
      %1201 = vmatpush1.msra.mxu0 0.0
      %1202 = vmatprep.subr.mxu0 0.0
      %1203 = vmatpush1.msra.mxu0 0.0
      %1204 = vmatprep.subr.mxu0 0.0
      %1205 = vmatpush1.msra.mxu0 0.0
      %1206 = vmatprep.subr.mxu0 0.0
      %1207 = vmatpush1.msra.mxu0 0.0
      %1208 = vmatprep.subr.mxu0 0.0
      %1209 = vmatpush1.msra.mxu0 0.0
      %1210 = vmatprep.subr.mxu0 0.0
      %1211 = vmatpush1.msra.mxu0 0.0
      %1212 = vmatprep.subr.mxu0 0.0
      %1213 = vmatpush1.msra.mxu0 0.0
      %1214 = vmatprep.subr.mxu0 0.0
      %1215 = vmatpush1.msra.mxu0 0.0
      %1216 = vmatprep.subr.mxu0 0.0
      %1217 = vmatpush1.msra.mxu0 0.0
      %1218 = vmatprep.subr.mxu0 0.0
      %1219 = vmatpush1.msra.mxu0 0.0
      %1220 = vmatprep.subr.mxu0 0.0
      %1221 = vmatpush1.msra.mxu0 0.0
      %1222 = vmatprep.subr.mxu0 0.0
      %1223 = vmatpush1.msra.mxu0 0.0
      %1224 = vmatprep.subr.mxu0 0.0
      %1225 = vmatpush1.msra.mxu0 0.0
      %1226 = vmatprep.subr.mxu0 0.0
      %1227 = vmatpush1.msra.mxu0 0.0
      %1228 = vmatprep.subr.mxu0 0.0
      %1229 = vmatpush1.msra.mxu0 0.0
      %1230 = vmatprep.subr.mxu0 0.0
      %1231 = vmatpush1.msra.mxu0 0.0
      %1232 = vmatprep.subr.mxu0 0.0
      %1233 = vmatpush1.msra.mxu0 0.0
      %1234 = vmatprep.subr.mxu0 0.0
      %1235 = vmatpush1.msra.mxu0 0.0
      %1236 = vmatprep.subr.mxu0 0.0
      %1237 = vmatpush1.msra.mxu0 0.0
      %1238 = vmatprep.subr.mxu0 0.0
      %1239 = vmatpush1.msra.mxu0 0.0
      %1240 = vmatprep.subr.mxu0 0.0
      %1241 = vmatpush1.msra.mxu0 0.0
      %1242 = vmatprep.subr.mxu0 0.0
      %1243 = vmatpush1.msra.mxu0 0.0
      %1244 = vmatprep.subr.mxu0 0.0
      %1245 = vmatpush1.msra.mxu0 0.0
      %1246 = vmatprep.subr.mxu0 0.0
      %1247 = vmatpush1.msra.mxu0 0.0
      %1248 = vmatprep.subr.mxu0 0.0
      %1249 = vmatpush1.msra.mxu0 0.0
      %1250 = vmatprep.subr.mxu0 0.0
      %1251 = vmatpush1.msra.mxu0 0.0
      %1252 = vmatprep.subr.mxu0 0.0
      %1253 = vmatpush1.msra.mxu0 0.0
      %1254 = vmatprep.subr.mxu0 0.0
      %1255 = vmatpush1.msra.mxu0 0.0
      %1256 = vmatprep.subr.mxu0 0.0
      %1257 = vmatpush1.msra.mxu0 0.0
      %1258 = vmatprep.mubr.f32.mxu0 0.0
      %1259 = vmatmul.mubr.f32.gmra.mrb[0].mxu0 %v1192
      %v1260 = vpop.f32.mrb[0].mxu0
      %v1261 = vadd.f32 0.0, %v1260
      %v1262 = vpop.f32.mrb[0].mxu0
      %1263 = vdwg.mxu0
      %v1265 = vsel %vm853, %v1017, 0
      %1267 = vmatprep.subr.mxu0 0.0
      %1268 = vmatpush1.msra.mxu0 %v1020
      %1269 = vmatprep.subr.mxu0 0.0
      %1270 = vmatpush1.msra.mxu0 %v1021
      %1271 = vmatprep.subr.mxu0 0.0
      %1272 = vmatpush1.msra.mxu0 0.0
      %1273 = vmatprep.subr.mxu0 0.0
      %1274 = vmatpush1.msra.mxu0 0.0
      %1275 = vmatprep.subr.mxu0 0.0
      %1276 = vmatpush1.msra.mxu0 0.0
      %1277 = vmatprep.subr.mxu0 0.0
      %1278 = vmatpush1.msra.mxu0 0.0
      %1279 = vmatprep.subr.mxu0 0.0
      %1280 = vmatpush1.msra.mxu0 0.0
      %1281 = vmatprep.subr.mxu0 0.0
      %1282 = vmatpush1.msra.mxu0 0.0
      %1283 = vmatprep.subr.mxu0 0.0
      %1284 = vmatpush1.msra.mxu0 0.0
      %1285 = vmatprep.subr.mxu0 0.0
      %1286 = vmatpush1.msra.mxu0 0.0
      %1287 = vmatprep.subr.mxu0 0.0
      %1288 = vmatpush1.msra.mxu0 0.0
      %1289 = vmatprep.subr.mxu0 0.0
      %1290 = vmatpush1.msra.mxu0 0.0
      %1291 = vmatprep.subr.mxu0 0.0
      %1292 = vmatpush1.msra.mxu0 0.0
      %1293 = vmatprep.subr.mxu0 0.0
      %1294 = vmatpush1.msra.mxu0 0.0
      %1295 = vmatprep.subr.mxu0 0.0
      %1296 = vmatpush1.msra.mxu0 0.0
      %1297 = vmatprep.subr.mxu0 0.0
      %1298 = vmatpush1.msra.mxu0 0.0
      %1299 = vmatprep.subr.mxu0 0.0
      %1300 = vmatpush1.msra.mxu0 0.0
      %1301 = vmatprep.subr.mxu0 0.0
      %1302 = vmatpush1.msra.mxu0 0.0
      %1303 = vmatprep.subr.mxu0 0.0
      %1304 = vmatpush1.msra.mxu0 0.0
      %1305 = vmatprep.subr.mxu0 0.0
      %1306 = vmatpush1.msra.mxu0 0.0
      %1307 = vmatprep.subr.mxu0 0.0
      %1308 = vmatpush1.msra.mxu0 0.0
      %1309 = vmatprep.subr.mxu0 0.0
      %1310 = vmatpush1.msra.mxu0 0.0
      %1311 = vmatprep.subr.mxu0 0.0
      %1312 = vmatpush1.msra.mxu0 0.0
      %1313 = vmatprep.subr.mxu0 0.0
      %1314 = vmatpush1.msra.mxu0 0.0
      %1315 = vmatprep.subr.mxu0 0.0
      %1316 = vmatpush1.msra.mxu0 0.0
      %1317 = vmatprep.subr.mxu0 0.0
      %1318 = vmatpush1.msra.mxu0 0.0
      %1319 = vmatprep.subr.mxu0 0.0
      %1320 = vmatpush1.msra.mxu0 0.0
      %1321 = vmatprep.subr.mxu0 0.0
      %1322 = vmatpush1.msra.mxu0 0.0
      %1323 = vmatprep.subr.mxu0 0.0
      %1324 = vmatpush1.msra.mxu0 0.0
      %1325 = vmatprep.subr.mxu0 0.0
      %1326 = vmatpush1.msra.mxu0 0.0
      %1327 = vmatprep.subr.mxu0 0.0
      %1328 = vmatpush1.msra.mxu0 0.0
      %1329 = vmatprep.subr.mxu0 0.0
      %1330 = vmatpush1.msra.mxu0 0.0
      %1331 = vmatprep.mubr.f32.mxu0 0.0
      %1332 = vmatmul.mubr.f32.gmra.mrb[0].mxu0 %v1265
      %v1333 = vpop.f32.mrb[0].mxu0
      %v1334 = vadd.f32 %v1261, %v1333
      %v1335 = vpop.f32.mrb[0].mxu0
      %1336 = vdwg.mxu0
      %v1337 = vadd.f32 %v728, %v1334
      %v1338 = vld [vmem:[%s8] sm:$0x1]
      %v1340 = vlaneseq
      %v1341 = vshrl.u32 %v1340, 7
      %v1342 = vsub.s32 0, %v1341
      %v1343 = vrot.slane %v1338, %v1342
      %v1345 = vadd.f32 %v1337, %v1343
      %v1346 = vsel %vm731, %v1345, 0.0
      %1347 = vadd.xlane.f32.xlu0 %v1346
      %v1348 = vpop.xlane.xlu0 %1347
      %v1349 = vmul.f32 %v1348, %v735
      %v1350 = vsub.f32 %v1345, %v1349
      %v1351 = vmul.f32 %v1350, %v1350
      %v1352 = vsel %vm731, %v1351, 0.0
      %1353 = vadd.xlane.f32.xlu0 %v1352
      %v1354 = vpop.xlane.xlu0 %1353
      %v1355 = vmul.f32 %v1354, %v735
      %v1356 = vadd.f32 %v1355, 1e-06
      %v1357 = vrsqrt.pop %v1356
      %v1358 = vmul.f32 %v1350, %v1357
      %v1359 = vld [vmem:[%s9] sm:$0x1]
      %v1361 = vlaneseq
      %v1362 = vshrl.u32 %v1361, 7
      %v1363 = vsub.s32 0, %v1362
      %v1364 = vrot.slane %v1359, %v1363
      %v1366 = vmul.f32 %v1358, %v1364
      %v1367 = vld [vmem:[%s10] sm:$0x1]
      %v1369 = vlaneseq
      %v1370 = vshrl.u32 %v1369, 7
      %v1371 = vsub.s32 0, %v1370
      %v1372 = vrot.slane %v1367, %v1371
      %v1374 = vadd.f32 %v1366, %v1372
      %v1375 = vld [vmem:[%s11] sm:$0xff]
      %v1376 = vld [vmem:[%s11 + $0x8] sm:$0xff]
      %v1377 = vld [vmem:[%s11 + $0x10] sm:$0xff]
      %v1378 = vld [vmem:[%s11 + $0x18] sm:$0xff]
      %v1379 = vld [vmem:[%s12] sm:$0x1]
      %v1381 = vlaneseq
      %v1382 = vshrl.u32 %v1381, 7
      %v1383 = vsub.s32 0, %v1382
      %v1384 = vrot.slane %v1379, %v1383
      %v1387 = vsel %vm773, %v1374, 0
      %1389 = vmatprep.subr.mxu0 0.0
      %1390 = vmatpush1.msra.mxu0 %v1375
      %1391 = vmatprep.subr.mxu0 0.0
      %1392 = vmatpush1.msra.mxu0 %v1376
      %1393 = vmatprep.subr.mxu0 0.0
      %1394 = vmatpush1.msra.mxu0 %v1377
      %1395 = vmatprep.subr.mxu0 0.0
      %1396 = vmatpush1.msra.mxu0 %v1378
      %1397 = vmatprep.subr.mxu0 0.0
      %1398 = vmatpush1.msra.mxu0 0.0
      %1399 = vmatprep.subr.mxu0 0.0
      %1400 = vmatpush1.msra.mxu0 0.0
      %1401 = vmatprep.subr.mxu0 0.0
      %1402 = vmatpush1.msra.mxu0 0.0
      %1403 = vmatprep.subr.mxu0 0.0
      %1404 = vmatpush1.msra.mxu0 0.0
      %1405 = vmatprep.subr.mxu0 0.0
      %1406 = vmatpush1.msra.mxu0 0.0
      %1407 = vmatprep.subr.mxu0 0.0
      %1408 = vmatpush1.msra.mxu0 0.0
      %1409 = vmatprep.subr.mxu0 0.0
      %1410 = vmatpush1.msra.mxu0 0.0
      %1411 = vmatprep.subr.mxu0 0.0
      %1412 = vmatpush1.msra.mxu0 0.0
      %1413 = vmatprep.subr.mxu0 0.0
      %1414 = vmatpush1.msra.mxu0 0.0
      %1415 = vmatprep.subr.mxu0 0.0
      %1416 = vmatpush1.msra.mxu0 0.0
      %1417 = vmatprep.subr.mxu0 0.0
      %1418 = vmatpush1.msra.mxu0 0.0
      %1419 = vmatprep.subr.mxu0 0.0
      %1420 = vmatpush1.msra.mxu0 0.0
      %1421 = vmatprep.subr.mxu0 0.0
      %1422 = vmatpush1.msra.mxu0 0.0
      %1423 = vmatprep.subr.mxu0 0.0
      %1424 = vmatpush1.msra.mxu0 0.0
      %1425 = vmatprep.subr.mxu0 0.0
      %1426 = vmatpush1.msra.mxu0 0.0
      %1427 = vmatprep.subr.mxu0 0.0
      %1428 = vmatpush1.msra.mxu0 0.0
      %1429 = vmatprep.subr.mxu0 0.0
      %1430 = vmatpush1.msra.mxu0 0.0
      %1431 = vmatprep.subr.mxu0 0.0
      %1432 = vmatpush1.msra.mxu0 0.0
      %1433 = vmatprep.subr.mxu0 0.0
      %1434 = vmatpush1.msra.mxu0 0.0
      %1435 = vmatprep.subr.mxu0 0.0
      %1436 = vmatpush1.msra.mxu0 0.0
      %1437 = vmatprep.subr.mxu0 0.0
      %1438 = vmatpush1.msra.mxu0 0.0
      %1439 = vmatprep.subr.mxu0 0.0
      %1440 = vmatpush1.msra.mxu0 0.0
      %1441 = vmatprep.subr.mxu0 0.0
      %1442 = vmatpush1.msra.mxu0 0.0
      %1443 = vmatprep.subr.mxu0 0.0
      %1444 = vmatpush1.msra.mxu0 0.0
      %1445 = vmatprep.subr.mxu0 0.0
      %1446 = vmatpush1.msra.mxu0 0.0
      %1447 = vmatprep.subr.mxu0 0.0
      %1448 = vmatpush1.msra.mxu0 0.0
      %1449 = vmatprep.subr.mxu0 0.0
      %1450 = vmatpush1.msra.mxu0 0.0
      %1451 = vmatprep.subr.mxu0 0.0
      %1452 = vmatpush1.msra.mxu0 0.0
      %1453 = vmatprep.mubr.f32.mxu0 0.0
      %1454 = vmatmul.mubr.f32.gmra.mrb[0].mxu0 %v1387
      %v1455 = vpop.f32.mrb[0].mxu0
      %v1456 = vadd.f32 %v1384, %v1455
      %v1457 = vpop.f32.mrb[0].mxu0
      %1458 = vdwg.mxu0
      %v1459 = vmul.f32 %v1456, 0.5
      %v1460 = vmul.f32 %v1456, 0.70710677
      %v1461 = verf.f32.pop %v1460
      %v1462 = vadd.f32 %v1461, 1.0
      %v1463 = vmul.f32 %v1459, %v1462
      %v1464 = vld [vmem:[%s13] sm:$0xff]
      %v1465 = vld [vmem:[%s13 + $0x8] sm:$0xff]
      %v1466 = vld [vmem:[%s13 + $0x10] sm:$0xff]
      %v1467 = vld [vmem:[%s13 + $0x18] sm:$0xff]
      %v1468 = vld [vmem:[%s13 + $0x20] sm:$0xff]
      %v1469 = vld [vmem:[%s13 + $0x28] sm:$0xff]
      %v1470 = vld [vmem:[%s13 + $0x30] sm:$0xff]
      %v1471 = vld [vmem:[%s13 + $0x38] sm:$0xff]
      %v1472 = vld [vmem:[%s13 + $0x40] sm:$0xff]
      %v1473 = vld [vmem:[%s13 + $0x48] sm:$0xff]
      %v1474 = vld [vmem:[%s13 + $0x50] sm:$0xff]
      %v1475 = vld [vmem:[%s13 + $0x58] sm:$0xff]
      %v1476 = vld [vmem:[%s13 + $0x60] sm:$0xff]
      %v1477 = vld [vmem:[%s13 + $0x68] sm:$0xff]
      %v1478 = vld [vmem:[%s13 + $0x70] sm:$0xff]
      %v1479 = vld [vmem:[%s13 + $0x78] sm:$0xff]
      %1480 = vmatprep.subr.mxu0 0.0
      %1481 = vmatpush1.msra.mxu0 %v1464
      %1482 = vmatprep.subr.mxu0 0.0
      %1483 = vmatpush1.msra.mxu0 %v1465
      %1484 = vmatprep.subr.mxu0 0.0
      %1485 = vmatpush1.msra.mxu0 %v1466
      %1486 = vmatprep.subr.mxu0 0.0
      %1487 = vmatpush1.msra.mxu0 %v1467
      %1488 = vmatprep.subr.mxu0 0.0
      %1489 = vmatpush1.msra.mxu0 %v1468
      %1490 = vmatprep.subr.mxu0 0.0
      %1491 = vmatpush1.msra.mxu0 %v1469
      %1492 = vmatprep.subr.mxu0 0.0
      %1493 = vmatpush1.msra.mxu0 %v1470
      %1494 = vmatprep.subr.mxu0 0.0
      %1495 = vmatpush1.msra.mxu0 %v1471
      %1496 = vmatprep.subr.mxu0 0.0
      %1497 = vmatpush1.msra.mxu0 %v1472
      %1498 = vmatprep.subr.mxu0 0.0
      %1499 = vmatpush1.msra.mxu0 %v1473
      %1500 = vmatprep.subr.mxu0 0.0
      %1501 = vmatpush1.msra.mxu0 %v1474
      %1502 = vmatprep.subr.mxu0 0.0
      %1503 = vmatpush1.msra.mxu0 %v1475
      %1504 = vmatprep.subr.mxu0 0.0
      %1505 = vmatpush1.msra.mxu0 %v1476
      %1506 = vmatprep.subr.mxu0 0.0
      %1507 = vmatpush1.msra.mxu0 %v1477
      %1508 = vmatprep.subr.mxu0 0.0
      %1509 = vmatpush1.msra.mxu0 %v1478
      %1510 = vmatprep.subr.mxu0 0.0
      %1511 = vmatpush1.msra.mxu0 %v1479
      %1512 = vmatprep.subr.mxu0 0.0
      %1513 = vmatpush1.msra.mxu0 0.0
      %1514 = vmatprep.subr.mxu0 0.0
      %1515 = vmatpush1.msra.mxu0 0.0
      %1516 = vmatprep.subr.mxu0 0.0
      %1517 = vmatpush1.msra.mxu0 0.0
      %1518 = vmatprep.subr.mxu0 0.0
      %1519 = vmatpush1.msra.mxu0 0.0
      %1520 = vmatprep.subr.mxu0 0.0
      %1521 = vmatpush1.msra.mxu0 0.0
      %1522 = vmatprep.subr.mxu0 0.0
      %1523 = vmatpush1.msra.mxu0 0.0
      %1524 = vmatprep.subr.mxu0 0.0
      %1525 = vmatpush1.msra.mxu0 0.0
      %1526 = vmatprep.subr.mxu0 0.0
      %1527 = vmatpush1.msra.mxu0 0.0
      %1528 = vmatprep.subr.mxu0 0.0
      %1529 = vmatpush1.msra.mxu0 0.0
      %1530 = vmatprep.subr.mxu0 0.0
      %1531 = vmatpush1.msra.mxu0 0.0
      %1532 = vmatprep.subr.mxu0 0.0
      %1533 = vmatpush1.msra.mxu0 0.0
      %1534 = vmatprep.subr.mxu0 0.0
      %1535 = vmatpush1.msra.mxu0 0.0
      %1536 = vmatprep.subr.mxu0 0.0
      %1537 = vmatpush1.msra.mxu0 0.0
      %1538 = vmatprep.subr.mxu0 0.0
      %1539 = vmatpush1.msra.mxu0 0.0
      %1540 = vmatprep.subr.mxu0 0.0
      %1541 = vmatpush1.msra.mxu0 0.0
      %1542 = vmatprep.subr.mxu0 0.0
      %1543 = vmatpush1.msra.mxu0 0.0
      %1544 = vmatprep.mubr.f32.mxu0 0.0
      %1545 = vmatmul.mubr.f32.gmra.mrb[0].mxu0 %v1463
      %v1546 = vpop.f32.mrb[0].mxu0
      %v1547 = vadd.f32 0.0, %v1546
      %v1548 = vpop.f32.mrb[0].mxu0
      %1549 = vdwg.mxu0
      %v1550 = vadd.f32 %v1345, %v1547
      %v1551 = vld [vmem:[%s14] sm:$0x1]
      %v1553 = vlaneseq
      %v1554 = vshrl.u32 %v1553, 7
      %v1555 = vsub.s32 0, %v1554
      %v1556 = vrot.slane %v1551, %v1555
      %v1558 = vadd.f32 %v1550, %v1556
      %v1559 = vsel %vm731, %v1558, 0.0
      %1560 = vadd.xlane.f32.xlu0 %v1559
      %v1561 = vpop.xlane.xlu0 %1560
      %v1562 = vmul.f32 %v1561, %v735
      %v1563 = vsub.f32 %v1558, %v1562
      %v1564 = vmul.f32 %v1563, %v1563
      %v1565 = vsel %vm731, %v1564, 0.0
      %1566 = vadd.xlane.f32.xlu0 %v1565
      %v1567 = vpop.xlane.xlu0 %1566
      %v1568 = vmul.f32 %v1567, %v735
      %v1569 = vadd.f32 %v1568, 1e-06
      %v1570 = vrsqrt.pop %v1569
      %v1571 = vmul.f32 %v1563, %v1570
      %v1572 = vld [vmem:[%s15] sm:$0x1]
      %v1574 = vlaneseq
      %v1575 = vshrl.u32 %v1574, 7
      %v1576 = vsub.s32 0, %v1575
      %v1577 = vrot.slane %v1572, %v1576
      %v1579 = vmul.f32 %v1571, %v1577
      %v1580 = vld [vmem:[%s16] sm:$0x1]
      %v1582 = vlaneseq
      %v1583 = vshrl.u32 %v1582, 7
      %v1584 = vsub.s32 0, %v1583
      %v1585 = vrot.slane %v1580, %v1584
      %v1587 = vadd.f32 %v1579, %v1585
      %v1588 = vld [vmem:[%s17] sm:$0xf]
      %v1589 = vld [vmem:[%s18] sm:$0xf]
      %1591 = vset.pattern.permute.xlu0 0
      %1592 = vperm.xlu0 %1591, %v1589
      %v1593 = vpop.permute.xlu0 %1592
      %v1596 = vsel %vm773, %v1588, 0
      %v1599 = vsel %vm773, %v1587, 0
      %1601 = vmatprep.subr.mxu0 0.0
      %1602 = vmatpush1.xpose.msra.mxu0 %v1599
      %1603 = vmatprep.subr.mxu0 0.0
      %1604 = vmatpush1.xpose.msra.mxu0 0.0
      %1605 = vmatprep.subr.mxu0 0.0
      %1606 = vmatpush1.xpose.msra.mxu0 0.0
      %1607 = vmatprep.subr.mxu0 0.0
      %1608 = vmatpush1.xpose.msra.mxu0 0.0
      %1609 = vmatprep.subr.mxu0 0.0
      %1610 = vmatpush1.xpose.msra.mxu0 0.0
      %1611 = vmatprep.subr.mxu0 0.0
      %1612 = vmatpush1.xpose.msra.mxu0 0.0
      %1613 = vmatprep.subr.mxu0 0.0
      %1614 = vmatpush1.xpose.msra.mxu0 0.0
      %1615 = vmatprep.subr.mxu0 0.0
      %1616 = vmatpush1.xpose.msra.mxu0 0.0
      %1617 = vmatprep.subr.mxu0 0.0
      %1618 = vmatpush1.xpose.msra.mxu0 0.0
      %1619 = vmatprep.subr.mxu0 0.0
      %1620 = vmatpush1.xpose.msra.mxu0 0.0
      %1621 = vmatprep.subr.mxu0 0.0
      %1622 = vmatpush1.xpose.msra.mxu0 0.0
      %1623 = vmatprep.subr.mxu0 0.0
      %1624 = vmatpush1.xpose.msra.mxu0 0.0
      %1625 = vmatprep.subr.mxu0 0.0
      %1626 = vmatpush1.xpose.msra.mxu0 0.0
      %1627 = vmatprep.subr.mxu0 0.0
      %1628 = vmatpush1.xpose.msra.mxu0 0.0
      %1629 = vmatprep.subr.mxu0 0.0
      %1630 = vmatpush1.xpose.msra.mxu0 0.0
      %1631 = vmatprep.subr.mxu0 0.0
      %1632 = vmatpush1.xpose.msra.mxu0 0.0
      %1633 = vmatprep.subr.mxu0 0.0
      %1634 = vmatpush1.xpose.msra.mxu0 0.0
      %1635 = vmatprep.subr.mxu0 0.0
      %1636 = vmatpush1.xpose.msra.mxu0 0.0
      %1637 = vmatprep.subr.mxu0 0.0
      %1638 = vmatpush1.xpose.msra.mxu0 0.0
      %1639 = vmatprep.subr.mxu0 0.0
      %1640 = vmatpush1.xpose.msra.mxu0 0.0
      %1641 = vmatprep.subr.mxu0 0.0
      %1642 = vmatpush1.xpose.msra.mxu0 0.0
      %1643 = vmatprep.subr.mxu0 0.0
      %1644 = vmatpush1.xpose.msra.mxu0 0.0
      %1645 = vmatprep.subr.mxu0 0.0
      %1646 = vmatpush1.xpose.msra.mxu0 0.0
      %1647 = vmatprep.subr.mxu0 0.0
      %1648 = vmatpush1.xpose.msra.mxu0 0.0
      %1649 = vmatprep.subr.mxu0 0.0
      %1650 = vmatpush1.xpose.msra.mxu0 0.0
      %1651 = vmatprep.subr.mxu0 0.0
      %1652 = vmatpush1.xpose.msra.mxu0 0.0
      %1653 = vmatprep.subr.mxu0 0.0
      %1654 = vmatpush1.xpose.msra.mxu0 0.0
      %1655 = vmatprep.subr.mxu0 0.0
      %1656 = vmatpush1.xpose.msra.mxu0 0.0
      %1657 = vmatprep.subr.mxu0 0.0
      %1658 = vmatpush1.xpose.msra.mxu0 0.0
      %1659 = vmatprep.subr.mxu0 0.0
      %1660 = vmatpush1.xpose.msra.mxu0 0.0
      %1661 = vmatprep.subr.mxu0 0.0
      %1662 = vmatpush1.xpose.msra.mxu0 0.0
      %1663 = vmatprep.subr.mxu0 0.0
      %1664 = vmatpush1.xpose.msra.mxu0 0.0
      %1665 = vmatprep.mubr.f32.mxu0 0.0
      %1666 = vmatmul.mubr.f32.gmra.mrb[0].mxu0 %v1596
      %v1667 = vpop.f32.mrb[0].mxu0
      %v1668 = vadd.f32 %v1593, %v1667
      %v1669 = vpop.f32.mrb[0].mxu0
      %1670 = vdwg.mxu0
      %v1671 = vld [vmem:[%s19] sm:$0x1f]
      %v1672 = vld [vmem:[%s19 + $0x8] sm:$0x1f]
      %v1674 = vsel %vm943, %v1668, 0
      %v1677 = vsel %vm947, %v1671, 0
      %v1680 = vsel %vm947, %v1672, 0
      %1682 = vmatprep.subr.mxu0 %v1680
      %1683 = vmatpush1.msra.mxu0 %v1677
      %1684 = vmatprep.subr.mxu0 0.0
      %1685 = vmatpush1.msra.mxu0 0.0
      %1686 = vmatprep.subr.mxu0 0.0
      %1687 = vmatpush1.msra.mxu0 0.0
      %1688 = vmatprep.subr.mxu0 0.0
      %1689 = vmatpush1.msra.mxu0 0.0
      %1690 = vmatprep.subr.mxu0 0.0
      %1691 = vmatpush1.msra.mxu0 0.0
      %1692 = vmatprep.subr.mxu0 0.0
      %1693 = vmatpush1.msra.mxu0 0.0
      %1694 = vmatprep.subr.mxu0 0.0
      %1695 = vmatpush1.msra.mxu0 0.0
      %1696 = vmatprep.subr.mxu0 0.0
      %1697 = vmatpush1.msra.mxu0 0.0
      %1698 = vmatprep.subr.mxu0 0.0
      %1699 = vmatpush1.msra.mxu0 0.0
      %1700 = vmatprep.subr.mxu0 0.0
      %1701 = vmatpush1.msra.mxu0 0.0
      %1702 = vmatprep.subr.mxu0 0.0
      %1703 = vmatpush1.msra.mxu0 0.0
      %1704 = vmatprep.subr.mxu0 0.0
      %1705 = vmatpush1.msra.mxu0 0.0
      %1706 = vmatprep.subr.mxu0 0.0
      %1707 = vmatpush1.msra.mxu0 0.0
      %1708 = vmatprep.subr.mxu0 0.0
      %1709 = vmatpush1.msra.mxu0 0.0
      %1710 = vmatprep.subr.mxu0 0.0
      %1711 = vmatpush1.msra.mxu0 0.0
      %1712 = vmatprep.subr.mxu0 0.0
      %1713 = vmatpush1.msra.mxu0 0.0
      %1714 = vmatprep.subr.mxu0 0.0
      %1715 = vmatpush1.msra.mxu0 0.0
      %1716 = vmatprep.subr.mxu0 0.0
      %1717 = vmatpush1.msra.mxu0 0.0
      %1718 = vmatprep.subr.mxu0 0.0
      %1719 = vmatpush1.msra.mxu0 0.0
      %1720 = vmatprep.subr.mxu0 0.0
      %1721 = vmatpush1.msra.mxu0 0.0
      %1722 = vmatprep.subr.mxu0 0.0
      %1723 = vmatpush1.msra.mxu0 0.0
      %1724 = vmatprep.subr.mxu0 0.0
      %1725 = vmatpush1.msra.mxu0 0.0
      %1726 = vmatprep.subr.mxu0 0.0
      %1727 = vmatpush1.msra.mxu0 0.0
      %1728 = vmatprep.subr.mxu0 0.0
      %1729 = vmatpush1.msra.mxu0 0.0
      %1730 = vmatprep.subr.mxu0 0.0
      %1731 = vmatpush1.msra.mxu0 0.0
      %1732 = vmatprep.subr.mxu0 0.0
      %1733 = vmatpush1.msra.mxu0 0.0
      %1734 = vmatprep.subr.mxu0 0.0
      %1735 = vmatpush1.msra.mxu0 0.0
      %1736 = vmatprep.subr.mxu0 0.0
      %1737 = vmatpush1.msra.mxu0 0.0
      %1738 = vmatprep.subr.mxu0 0.0
      %1739 = vmatpush1.msra.mxu0 0.0
      %1740 = vmatprep.subr.mxu0 0.0
      %1741 = vmatpush1.msra.mxu0 0.0
      %1742 = vmatprep.subr.mxu0 0.0
      %1743 = vmatpush1.msra.mxu0 0.0
      %1744 = vmatprep.subr.mxu0 0.0
      %1745 = vmatpush1.msra.mxu0 0.0
      %1746 = vmatprep.mubr.f32.mxu0 0.0
      %1747 = vmatmul.mubr.f32.gmra.mrb[0].mxu0 %v1674
      %v1748 = vpop.f32.mrb[0].mxu0
      %v1749 = vadd.f32 0.0, %v1748
      %v1750 = vpop.f32.mrb[0].mxu0
      %v1751 = vadd.f32 0.0, %v1750
      %1752 = vdwg.mxu0
      %v1755 = vcombine.low %v1749, %v1751
      %1757 = vst [vmem:[%s629] sm:$0xff] %v1755
      %p1758 = scmp.lt.s32.totalorder %s31, 1
      %s1759 = scalar_select %p1758, %s31, 1
      %s1760 = smul.addr %s1759, 2
      %s1761 = smul.addr %s1760, 4
      %s1762 = scalar_lea.vmem %s20, %s1761
      // Predicated region
      $region101: #{segmenter_forward.1} parent=99 // pred_check
        %p1763 = pneg %p474
      $region102: #{segmenter_forward.1} parent=99 // pred_check_branch
        %1765 = sbr.rel (%p1763) target = $region104
      $region103: #{segmenter_forward.1} parent=99 // pred_region
        _
      $region104: #{segmenter_forward.1} parent=99 // pred_fallthru
        _
    $region100: #{segmenter_forward.1} parent=5 // pred_fallthru
      _
    %p1766 = scmp.le.s32.totalorder 2, %s26
    // Predicated region
    $region105: #{segmenter_forward.1} parent=5 // pred_check
      %p1767 = pneg %p1766
    $region106: #{segmenter_forward.1} parent=5 // pred_check_branch
      %1769 = sbr.rel (%p1767) target = $region108
    $region107: #{segmenter_forward.1} parent=5 // pred_region
      %s1770 = ssub.s32 %s26, 2
      // Predicated region
      $region109: #{segmenter_forward.1} parent=107 // pred_check
        %p1771 = pneg %p480
      $region110: #{segmenter_forward.1} parent=107 // pred_check_branch
        %1773 = sbr.rel (%p1771) target = $region112
      $region111: #{segmenter_forward.1} parent=107 // pred_region
        %p1774 = scmp.lt.s32.totalorder %s32, 1
        %s1775 = scalar_select %p1774, %s32, 1
        %s1776 = smul.addr %s1775, 2
        %s1777 = smul.addr %s1776, 4
        %s1778 = scalar_lea.vmem %s20, %s1777
      $region112: #{segmenter_forward.1} parent=107 // pred_fallthru
        _
    $region108: #{segmenter_forward.1} parent=5 // pred_fallthru
      _
  $region6: #{segmenter_forward.1} parent=0 // loop_footer
    %s30 = sadd.s32 1, %s26
  $region7: #{segmenter_forward.1} parent=0 // loop_footer_branch
    %25 = sbr.rel target = $region3
  $region8: #{segmenter_forward.1} parent=0 // loop_exit
    _

</llo_original>
